<compile_context>
chip_gen: v7x
topology: tpu7x:2x2x1
jax: 0.10.0
libtpu: 0.0.40
codegen_flags: <defaults>
</compile_context>

<pallas_src>
import functools
import math

import jax
import jax.numpy as jnp
from jax import lax
from jax.experimental import pallas as pl
from jax.experimental.pallas import tpu as pltpu


# ---------------------------------------------------------------------------
# Pallas kernels: transposed GEMM + bias + tanh + BatchNorm epilogue (single VMEM block)
# ---------------------------------------------------------------------------

def _gemm_tanh_bn_kernel(w_ref, x_ref, b_ref, o_ref, *, apply_tanh, apply_bn, eps):
    """out = BN(tanh(W @ X + b)) with per-row (= per output channel) batch statistics.

    W: (Cout, K)   X: (K, M)   b: (Cout, 1)   out: (Cout, M),  M = N*OH*OW on the lane axis.
    """
    acc = jnp.dot(w_ref[...], x_ref[...], preferred_element_type=jnp.float32)
    acc = acc + b_ref[...]
    if apply_tanh:
        acc = jnp.tanh(acc)
    if apply_bn:
        # BatchNorm2d training-mode forward, default affine (gamma=1, beta=0): per-channel
        # statistics over all M = N*OH*OW lanes, biased variance.
        mean = jnp.mean(acc, axis=1, keepdims=True)          # lane (XLU) reduction
        cen = acc - mean
        var = jnp.mean(cen * cen, axis=1, keepdims=True)
        acc = cen * lax.rsqrt(var + eps)
    o_ref[...] = acc


def _fc_tanh_groupbn_kernel(w_ref, x_ref, b_ref, g_ref, o_ref, *, eps):
    """Decoder fc stage: out = GroupBN(tanh(W @ X + b)).

    W: (F, F)  X: (F, N)  b: (F, 1)  G: (F, F).
    Row f corresponds to (channel, spatial) = (f // spatial, f % spatial) of the PyTorch
    view(-1, C, H, W); BatchNorm2d pools `spatial` consecutive rows, expressed with the constant
    group-averaging matrix G (G[r, r'] = 1/spatial iff same channel group) so everything stays 2-D.
    """
    acc = jnp.dot(w_ref[...], x_ref[...], preferred_element_type=jnp.float32)
    acc = jnp.tanh(acc + b_ref[...])
    g = g_ref[...]
    ch_mean = jnp.mean(jnp.dot(g, acc, preferred_element_type=jnp.float32),
                       axis=1, keepdims=True)
    cen = acc - ch_mean
    ch_var = jnp.mean(jnp.dot(g, cen * cen, preferred_element_type=jnp.float32),
                      axis=1, keepdims=True)
    o_ref[...] = cen * lax.rsqrt(ch_var + eps)


def fused_gemm_tanh_bn(w, x, b, *, apply_tanh=True, apply_bn=True, eps=1e-5):
    """BN(tanh(w @ x + b)).  w:(O,K)  x:(K,M)  b:(O,) -> (O, M); single VMEM block, f32."""
    O, K = w.shape
    _, M = x.shape
    kernel = functools.partial(_gemm_tanh_bn_kernel, apply_tanh=apply_tanh,
                               apply_bn=apply_bn, eps=eps)
    return pl.pallas_call(
        kernel,
        out_shape=jax.ShapeDtypeStruct((O, M), jnp.float32),
        grid=(1,),
        in_specs=[pl.BlockSpec((O, K), lambda i: (0, 0)),
                  pl.BlockSpec((K, M), lambda i: (0, 0)),
                  pl.BlockSpec((O, 1), lambda i: (0, 0))],
        out_specs=pl.BlockSpec((O, M), lambda i: (0, 0)),
        compiler_params=pltpu.CompilerParams(dimension_semantics=("arbitrary",)),
    )(w.astype(jnp.float32), x.astype(jnp.float32),
      b.reshape(O, 1).astype(jnp.float32))


def fused_fc_tanh_groupbn(w, x, b, g, *, eps=1e-5):
    """GroupBN(tanh(w @ x + b)).  w:(F,F)  x:(F,N)  b:(F,)  g:(F,F) -> (F, N)."""
    F, K = w.shape
    _, M = x.shape
    return pl.pallas_call(
        functools.partial(_fc_tanh_groupbn_kernel, eps=eps),
        out_shape=jax.ShapeDtypeStruct((F, M), jnp.float32),
        grid=(1,),
        in_specs=[pl.BlockSpec((F, K), lambda i: (0, 0)),
                  pl.BlockSpec((K, M), lambda i: (0, 0)),
                  pl.BlockSpec((F, 1), lambda i: (0, 0)),
                  pl.BlockSpec((F, F), lambda i: (0, 0))],
        out_specs=pl.BlockSpec((F, M), lambda i: (0, 0)),
        compiler_params=pltpu.CompilerParams(dimension_semantics=("arbitrary",)),
    )(w.astype(jnp.float32), x.astype(jnp.float32),
      b.reshape(F, 1).astype(jnp.float32), g.astype(jnp.float32))


# ---------------------------------------------------------------------------
# Host glue (channel-major layout; XLA fuses pad/slice/stack/reshape into one fusion per layer)
# ---------------------------------------------------------------------------

def _im2col_cm(xp, kh, kw, stride):
    """xp: padded channel-major input (C, N, Hp, Wp).

    Returns patches (C*kh*kw, N*OH*OW): K rows ordered (C, kh, kw) to match the PyTorch Conv2d
    weight flatten; M columns ordered (N, OH, OW) so M lands on the lane axis downstream.
    """
    C, N, Hp, Wp = xp.shape
    OH = (Hp - kh) // stride + 1
    OW = (Wp - kw) // stride + 1
    cols = []
    for i in range(kh):
        for j in range(kw):
            cols.append(xp[:, :, i:i + stride * OH:stride, j:j + stride * OW:stride])
    patches = jnp.stack(cols, axis=1)                        # (C, kh*kw, N, OH, OW)
    return patches.reshape(C * kh * kw, N * OH * OW), OH, OW


def conv2d_cm(x_cm, w, b, *, stride, pad, apply_tanh=True, apply_bn=True):
    """PyTorch Conv2d (+tanh+BN fused).  x_cm: (Cin, N, H, W); w: (Cout, Cin, KH, KW); b: (Cout,)."""
    Cin, N, H, W = x_cm.shape
    Cout, _, KH, KW = w.shape
    if pad:
        x_cm = jnp.pad(x_cm, ((0, 0), (0, 0), (pad, pad), (pad, pad)))
    patches, OH, OW = _im2col_cm(x_cm, KH, KW, stride)
    wmat = w.reshape(Cout, Cin * KH * KW)
    out = fused_gemm_tanh_bn(wmat, patches, b, apply_tanh=apply_tanh, apply_bn=apply_bn)
    return out.reshape(Cout, N, OH, OW)


def conv_transpose2d_cm(x_cm, w_t, b, *, stride, pad, out_pad, apply_tanh=True, apply_bn=True):
    """PyTorch ConvTranspose2d (+tanh+BN fused).  x_cm: (Cin, N, H, W); w_t: (Cin, Cout, KH, KW)."""
    Cin, Cout, KH, KW = w_t.shape
    # Equivalent stride-1 convolution with flipped, channel-swapped kernel.
    w_conv = jnp.flip(w_t, axis=(2, 3)).transpose(1, 0, 2, 3)          # (Cout, Cin, KH, KW)
    lo_h, hi_h = KH - 1 - pad, KH - 1 - pad + out_pad
    lo_w, hi_w = KW - 1 - pad, KW - 1 - pad + out_pad
    # Zero-upsample (interior padding) + edge pad as a single lax.pad op.
    # NOTE: a sub-pixel (stride^2 sub-conv) decomposition would avoid the ~75% zero MACs at scale.
    zero = jnp.array(0.0, x_cm.dtype)
    xd = lax.pad(x_cm, zero, ((0, 0, 0), (0, 0, 0),
                              (lo_h, hi_h, stride - 1), (lo_w, hi_w, stride - 1)))
    return conv2d_cm(xd, w_conv, b, stride=1, pad=0, apply_tanh=apply_tanh, apply_bn=apply_bn)


def _fc_bn_group_matrix(channels, spatial):
    r = jnp.arange(channels * spatial) // spatial
    return (r[:, None] == r[None, :]).astype(jnp.float32) / float(spatial)


# ---------------------------------------------------------------------------
# Model
# ---------------------------------------------------------------------------

def init_params(key, c, hls, h_shape, last_channel):
    """Deterministic init mimicking PyTorch default uniform(-1/sqrt(fan_in), +)."""
    h_channels = h_shape[0] * h_shape[1] * h_shape[2]

    def u(key, shape, fan_in):
        bound = 1.0 / math.sqrt(fan_in)
        return jax.random.uniform(key, shape, jnp.float32, -bound, bound)

    ks = jax.random.split(key, 16)
    p = {}
    # encoder
    p["ec1_w"] = u(ks[0], (hls[0], c, 5, 5), c * 25);           p["ec1_b"] = u(ks[1], (hls[0],), c * 25)
    p["ec2_w"] = u(ks[2], (hls[1], hls[0], 5, 5), hls[0] * 25); p["ec2_b"] = u(ks[3], (hls[1],), hls[0] * 25)
    p["ec3_w"] = u(ks[4], (hls[2], hls[1], 3, 3), hls[1] * 9);  p["ec3_b"] = u(ks[5], (hls[2],), hls[1] * 9)
    # decoder
    p["fc_w"] = u(ks[6], (h_channels, h_channels), h_channels); p["fc_b"] = u(ks[7], (h_channels,), h_channels)
    p["dc1_w"] = u(ks[8], (h_shape[0], hls[1], 3, 3), h_shape[0] * 9);  p["dc1_b"] = u(ks[9], (hls[1],), h_shape[0] * 9)
    p["dc2_w"] = u(ks[10], (hls[1], hls[0], 5, 5), hls[1] * 25);        p["dc2_b"] = u(ks[11], (hls[0],), hls[1] * 25)
    p["dc3_w"] = u(ks[12], (hls[0], last_channel, 5, 5), hls[0] * 25);  p["dc3_b"] = u(ks[13], (last_channel,), hls[0] * 25)
    return p


def mtq_mnist_forward(x, params, h_shape):
    N = x.shape[0]
    C0, HH, WW = h_shape
    spatial = HH * WW

    # boundary: NCHW -> channel-major (C, N, H, W); the only input-side layout conversion.
    h = x.transpose(1, 0, 2, 3).astype(jnp.float32)

    # ---- encoder: (conv5 s2 p2 + tanh + BN) x2, (conv3 s2 p0 + tanh + BN), each one kernel ----
    h = conv2d_cm(h, params["ec1_w"], params["ec1_b"], stride=2, pad=2)
    h = conv2d_cm(h, params["ec2_w"], params["ec2_b"], stride=2, pad=2)
    y = conv2d_cm(h, params["ec3_w"], params["ec3_b"], stride=2, pad=0)      # (C0, N, HH, WW)

    # z in the PyTorch layout (N, C*H*W) — model output, converted once here.
    z = y.transpose(1, 0, 2, 3).reshape(N, -1)

    # ---- estimator ----
    # TODO(synk): TinvSOS source not provided; returning identity s=z and zero log-jacobian.
    s = z
    log_jacob_T_inverse = jnp.zeros((N,), jnp.float32)

    # ---- decoder: (fc + tanh + group-BN) then 3 fused deconv stages ----
    gmat = _fc_bn_group_matrix(C0, spatial)
    hf = fused_fc_tanh_groupbn(params["fc_w"], z.T, params["fc_b"], gmat)    # (C0*spatial, N)
    h = hf.reshape(C0, spatial, N).transpose(0, 2, 1).reshape(C0, N, HH, WW)
    h = conv_transpose2d_cm(h, params["dc1_w"], params["dc1_b"], stride=2, pad=0, out_pad=0)
    h = conv_transpose2d_cm(h, params["dc2_w"], params["dc2_b"], stride=2, pad=2, out_pad=1)
    xr = conv_transpose2d_cm(h, params["dc3_w"], params["dc3_b"], stride=2, pad=2, out_pad=1,
                             apply_bn=False)
    x_r = xr.transpose(1, 0, 2, 3)                                            # back to NCHW
    return x_r, z, s, log_jacob_T_inverse


# ---------------------------------------------------------------------------
# main
# ---------------------------------------------------------------------------

if __name__ == "__main__":
    # Shapes consistent with the module: H=W=20 -> 10 -> 5 -> 2, and 20//8 == 2.
    # hidden_layer_sizes=(4, 8, 8), c=1, last_channel=1, h_shape=(8,2,2) -> h_channels=32.
    batch, c, H, W = 2, 1, 20, 20
    hls = (4, 8, 8)
    h_shape = (hls[2], H // 8, W // 8)
    last_channel = 1

    key = jax.random.PRNGKey(0)
    k_x, k_p = jax.random.split(key)
    x = jax.random.normal(k_x, (batch, c, H, W), jnp.float32)
    params = init_params(k_p, c, hls, h_shape, last_channel)

    fwd = jax.jit(functools.partial(mtq_mnist_forward, h_shape=h_shape))
    x_r, z, s, log_jac = fwd(x, params)
    jax.block_until_ready((x_r, z, s, log_jac))

    assert x_r.shape == (batch, last_channel, H, W), x_r.shape
    assert z.shape == (batch, h_shape[0] * h_shape[1] * h_shape[2]), z.shape
    assert s.shape == z.shape
    assert log_jac.shape == (batch,)
    assert bool(jnp.all(jnp.isfinite(x_r))) and bool(jnp.all(jnp.isfinite(z)))
    print("KERNEL_OK")
</pallas_src>

<mosaic_0001>
module attributes {stable_mosaic.version = 11 : i64} {
  func.func @_gemm_tanh_bn_kernel(%arg0: i32, %arg1: memref<4x25xf32, #tpu.memory_space<vmem>>, %arg2: memref<25x200xf32, #tpu.memory_space<vmem>>, %arg3: memref<4x1xf32, #tpu.memory_space<vmem>>, %arg4: memref<4x200xf32, #tpu.memory_space<vmem>>) attributes {dimension_semantics = [#tpu.dimension_semantics<arbitrary>], iteration_bounds = array<i64: 1>, scalar_prefetch = 0 : i64, scratch_operands = 0 : i64, tpu.core_type = #tpu.core_type<tc>, window_params = [{pipeline_mode = #tpu.pipeline_mode<synchronous>, transform_indices = @transform_0, window_bounds = array<i64: 4, 25>}, {pipeline_mode = #tpu.pipeline_mode<synchronous>, transform_indices = @transform_1, window_bounds = array<i64: 25, 200>}, {pipeline_mode = #tpu.pipeline_mode<synchronous>, transform_indices = @transform_2, window_bounds = array<i64: 4, 1>}, {pipeline_mode = #tpu.pipeline_mode<synchronous>, transform_indices = @transform_3, window_bounds = array<i64: 4, 200>}]} {
    %c0 = arith.constant 0 : index
    %c0_0 = arith.constant 0 : index
    %0 = vector.load %arg1[%c0, %c0_0] : memref<4x25xf32, #tpu.memory_space<vmem>>, vector<4x25xf32>
    %c0_1 = arith.constant 0 : index
    %c0_2 = arith.constant 0 : index
    %1 = vector.load %arg2[%c0_1, %c0_2] : memref<25x200xf32, #tpu.memory_space<vmem>>, vector<25x200xf32>
    %cst = arith.constant dense<0.000000e+00> : vector<4x200xf32>
    %2 = tpu.matmul %0, %1, %cst {dimension_numbers = #tpu.dot_dimension_numbers<[1], [0], [0], [1], [0, 0, 1, 1], [], []>} : vector<4x25xf32>, vector<25x200xf32>, vector<4x200xf32> -> vector<4x200xf32>
    %c0_3 = arith.constant 0 : index
    %c0_4 = arith.constant 0 : index
    %3 = vector.load %arg3[%c0_3, %c0_4] : memref<4x1xf32, #tpu.memory_space<vmem>>, vector<4x1xf32>
    %4 = vector.broadcast %3 : vector<4x1xf32> to vector<4x200xf32>
    %5 = arith.addf %2, %4 : vector<4x200xf32>
    %6 = math.tanh %5 : vector<4x200xf32>
    %cst_5 = arith.constant dense<0.000000e+00> : vector<4xf32>
    %7 = vector.multi_reduction <add>, %6, %cst_5 [1] : vector<4x200xf32> to vector<4xf32>
    %8 = vector.shape_cast %7 : vector<4xf32> to vector<4x1xf32>
    %cst_6 = arith.constant 2.000000e+02 : f32
    %9 = vector.broadcast %cst_6 : f32 to vector<4x1xf32>
    %10 = arith.divf %8, %9 : vector<4x1xf32>
    %11 = vector.broadcast %10 : vector<4x1xf32> to vector<4x200xf32>
    %12 = arith.subf %6, %11 : vector<4x200xf32>
    %13 = arith.mulf %12, %12 : vector<4x200xf32>
    %cst_7 = arith.constant dense<0.000000e+00> : vector<4xf32>
    %14 = vector.multi_reduction <add>, %13, %cst_7 [1] : vector<4x200xf32> to vector<4xf32>
    %15 = vector.shape_cast %14 : vector<4xf32> to vector<4x1xf32>
    %cst_8 = arith.constant 2.000000e+02 : f32
    %16 = vector.broadcast %cst_8 : f32 to vector<4x1xf32>
    %17 = arith.divf %15, %16 : vector<4x1xf32>
    %cst_9 = arith.constant 9.99999974E-6 : f32
    %18 = vector.broadcast %cst_9 : f32 to vector<4x1xf32>
    %19 = arith.addf %17, %18 : vector<4x1xf32>
    %20 = math.rsqrt %19 : vector<4x1xf32>
    %21 = vector.broadcast %20 : vector<4x1xf32> to vector<4x200xf32>
    %22 = arith.mulf %12, %21 : vector<4x200xf32>
    %c0_10 = arith.constant 0 : index
    %c0_11 = arith.constant 0 : index
    %23 = vector.load %arg4[%c0_10, %c0_11] : memref<4x200xf32, #tpu.memory_space<vmem>>, vector<4x200xf32>
    tpu.vector_store %arg4[%c0_10, %c0_11], %22 {strides = array<i32>} : memref<4x200xf32, #tpu.memory_space<vmem>>, vector<4x200xf32>,
    return
  }
  func.func @transform_0(%arg0: i32) -> (i32, i32) {
    %c0_i32 = arith.constant 0 : i32
    %c0_i32_0 = arith.constant 0 : i32
    %c0_i32_1 = arith.constant 0 : i32
    return %c0_i32, %c0_i32_0 : i32, i32
  }
  func.func @transform_1(%arg0: i32) -> (i32, i32) {
    %c0_i32 = arith.constant 0 : i32
    %c0_i32_0 = arith.constant 0 : i32
    %c0_i32_1 = arith.constant 0 : i32
    return %c0_i32, %c0_i32_0 : i32, i32
  }
  func.func @transform_2(%arg0: i32) -> (i32, i32) {
    %c0_i32 = arith.constant 0 : i32
    %c0_i32_0 = arith.constant 0 : i32
    %c0_i32_1 = arith.constant 0 : i32
    return %c0_i32, %c0_i32_0 : i32, i32
  }
  func.func @transform_3(%arg0: i32) -> (i32, i32) {
    %c0_i32 = arith.constant 0 : i32
    %c0_i32_0 = arith.constant 0 : i32
    %c0_i32_1 = arith.constant 0 : i32
    return %c0_i32, %c0_i32_0 : i32, i32
  }
}

module attributes {stable_mosaic.version = 11 : i64} {
  func.func @_gemm_tanh_bn_kernel(%arg0: i32, %arg1: memref<8x100xf32, #tpu.memory_space<vmem>>, %arg2: memref<100x50xf32, #tpu.memory_space<vmem>>, %arg3: memref<8x1xf32, #tpu.memory_space<vmem>>, %arg4: memref<8x50xf32, #tpu.memory_space<vmem>>) attributes {dimension_semantics = [#tpu.dimension_semantics<arbitrary>], iteration_bounds = array<i64: 1>, scalar_prefetch = 0 : i64, scratch_operands = 0 : i64, tpu.core_type = #tpu.core_type<tc>, window_params = [{pipeline_mode = #tpu.pipeline_mode<synchronous>, transform_indices = @transform_0, window_bounds = array<i64: 8, 100>}, {pipeline_mode = #tpu.pipeline_mode<synchronous>, transform_indices = @transform_1, window_bounds = array<i64: 100, 50>}, {pipeline_mode = #tpu.pipeline_mode<synchronous>, transform_indices = @transform_2, window_bounds = array<i64: 8, 1>}, {pipeline_mode = #tpu.pipeline_mode<synchronous>, transform_indices = @transform_3, window_bounds = array<i64: 8, 50>}]} {
    %c0 = arith.constant 0 : index
    %c0_0 = arith.constant 0 : index
    %0 = vector.load %arg1[%c0, %c0_0] : memref<8x100xf32, #tpu.memory_space<vmem>>, vector<8x100xf32>
    %c0_1 = arith.constant 0 : index
    %c0_2 = arith.constant 0 : index
    %1 = vector.load %arg2[%c0_1, %c0_2] : memref<100x50xf32, #tpu.memory_space<vmem>>, vector<100x50xf32>
    %cst = arith.constant dense<0.000000e+00> : vector<8x50xf32>
    %2 = tpu.matmul %0, %1, %cst {dimension_numbers = #tpu.dot_dimension_numbers<[1], [0], [0], [1], [0, 0, 1, 1], [], []>} : vector<8x100xf32>, vector<100x50xf32>, vector<8x50xf32> -> vector<8x50xf32>
    %c0_3 = arith.constant 0 : index
    %c0_4 = arith.constant 0 : index
    %3 = vector.load %arg3[%c0_3, %c0_4] : memref<8x1xf32, #tpu.memory_space<vmem>>, vector<8x1xf32>
    %4 = vector.broadcast %3 : vector<8x1xf32> to vector<8x50xf32>
    %5 = arith.addf %2, %4 : vector<8x50xf32>
    %6 = math.tanh %5 : vector<8x50xf32>
    %cst_5 = arith.constant dense<0.000000e+00> : vector<8xf32>
    %7 = vector.multi_reduction <add>, %6, %cst_5 [1] : vector<8x50xf32> to vector<8xf32>
    %8 = vector.shape_cast %7 : vector<8xf32> to vector<8x1xf32>
    %cst_6 = arith.constant 5.000000e+01 : f32
    %9 = vector.broadcast %cst_6 : f32 to vector<8x1xf32>
    %10 = arith.divf %8, %9 : vector<8x1xf32>
    %11 = vector.broadcast %10 : vector<8x1xf32> to vector<8x50xf32>
    %12 = arith.subf %6, %11 : vector<8x50xf32>
    %13 = arith.mulf %12, %12 : vector<8x50xf32>
    %cst_7 = arith.constant dense<0.000000e+00> : vector<8xf32>
    %14 = vector.multi_reduction <add>, %13, %cst_7 [1] : vector<8x50xf32> to vector<8xf32>
    %15 = vector.shape_cast %14 : vector<8xf32> to vector<8x1xf32>
    %cst_8 = arith.constant 5.000000e+01 : f32
    %16 = vector.broadcast %cst_8 : f32 to vector<8x1xf32>
    %17 = arith.divf %15, %16 : vector<8x1xf32>
    %cst_9 = arith.constant 9.99999974E-6 : f32
    %18 = vector.broadcast %cst_9 : f32 to vector<8x1xf32>
    %19 = arith.addf %17, %18 : vector<8x1xf32>
    %20 = math.rsqrt %19 : vector<8x1xf32>
    %21 = vector.broadcast %20 : vector<8x1xf32> to vector<8x50xf32>
    %22 = arith.mulf %12, %21 : vector<8x50xf32>
    %c0_10 = arith.constant 0 : index
    %c0_11 = arith.constant 0 : index
    %23 = vector.load %arg4[%c0_10, %c0_11] : memref<8x50xf32, #tpu.memory_space<vmem>>, vector<8x50xf32>
    tpu.vector_store %arg4[%c0_10, %c0_11], %22 {strides = array<i32>} : memref<8x50xf32, #tpu.memory_space<vmem>>, vector<8x50xf32>,
    return
  }
  func.func @transform_0(%arg0: i32) -> (i32, i32) {
    %c0_i32 = arith.constant 0 : i32
    %c0_i32_0 = arith.constant 0 : i32
    %c0_i32_1 = arith.constant 0 : i32
    return %c0_i32, %c0_i32_0 : i32, i32
  }
  func.func @transform_1(%arg0: i32) -> (i32, i32) {
    %c0_i32 = arith.constant 0 : i32
    %c0_i32_0 = arith.constant 0 : i32
    %c0_i32_1 = arith.constant 0 : i32
    return %c0_i32, %c0_i32_0 : i32, i32
  }
  func.func @transform_2(%arg0: i32) -> (i32, i32) {
    %c0_i32 = arith.constant 0 : i32
    %c0_i32_0 = arith.constant 0 : i32
    %c0_i32_1 = arith.constant 0 : i32
    return %c0_i32, %c0_i32_0 : i32, i32
  }
  func.func @transform_3(%arg0: i32) -> (i32, i32) {
    %c0_i32 = arith.constant 0 : i32
    %c0_i32_0 = arith.constant 0 : i32
    %c0_i32_1 = arith.constant 0 : i32
    return %c0_i32, %c0_i32_0 : i32, i32
  }
}

module attributes {stable_mosaic.version = 11 : i64} {
  func.func @_gemm_tanh_bn_kernel(%arg0: i32, %arg1: memref<8x72xf32, #tpu.memory_space<vmem>>, %arg2: memref<72x8xf32, #tpu.memory_space<vmem>>, %arg3: memref<8x1xf32, #tpu.memory_space<vmem>>, %arg4: memref<8x8xf32, #tpu.memory_space<vmem>>) attributes {dimension_semantics = [#tpu.dimension_semantics<arbitrary>], iteration_bounds = array<i64: 1>, scalar_prefetch = 0 : i64, scratch_operands = 0 : i64, tpu.core_type = #tpu.core_type<tc>, window_params = [{pipeline_mode = #tpu.pipeline_mode<synchronous>, transform_indices = @transform_0, window_bounds = array<i64: 8, 72>}, {pipeline_mode = #tpu.pipeline_mode<synchronous>, transform_indices = @transform_1, window_bounds = array<i64: 72, 8>}, {pipeline_mode = #tpu.pipeline_mode<synchronous>, transform_indices = @transform_2, window_bounds = array<i64: 8, 1>}, {pipeline_mode = #tpu.pipeline_mode<synchronous>, transform_indices = @transform_3, window_bounds = array<i64: 8, 8>}]} {
    %c0 = arith.constant 0 : index
    %c0_0 = arith.constant 0 : index
    %0 = vector.load %arg1[%c0, %c0_0] : memref<8x72xf32, #tpu.memory_space<vmem>>, vector<8x72xf32>
    %c0_1 = arith.constant 0 : index
    %c0_2 = arith.constant 0 : index
    %1 = vector.load %arg2[%c0_1, %c0_2] : memref<72x8xf32, #tpu.memory_space<vmem>>, vector<72x8xf32>
    %cst = arith.constant dense<0.000000e+00> : vector<8x8xf32>
    %2 = tpu.matmul %0, %1, %cst {dimension_numbers = #tpu.dot_dimension_numbers<[1], [0], [0], [1], [0, 0, 1, 1], [], []>} : vector<8x72xf32>, vector<72x8xf32>, vector<8x8xf32> -> vector<8x8xf32>
    %c0_3 = arith.constant 0 : index
    %c0_4 = arith.constant 0 : index
    %3 = vector.load %arg3[%c0_3, %c0_4] : memref<8x1xf32, #tpu.memory_space<vmem>>, vector<8x1xf32>
    %4 = vector.broadcast %3 : vector<8x1xf32> to vector<8x8xf32>
    %5 = arith.addf %2, %4 : vector<8x8xf32>
    %6 = math.tanh %5 : vector<8x8xf32>
    %cst_5 = arith.constant dense<0.000000e+00> : vector<8xf32>
    %7 = vector.multi_reduction <add>, %6, %cst_5 [1] : vector<8x8xf32> to vector<8xf32>
    %8 = vector.shape_cast %7 : vector<8xf32> to vector<8x1xf32>
    %cst_6 = arith.constant 8.000000e+00 : f32
    %9 = vector.broadcast %cst_6 : f32 to vector<8x1xf32>
    %10 = arith.divf %8, %9 : vector<8x1xf32>
    %11 = vector.broadcast %10 : vector<8x1xf32> to vector<8x8xf32>
    %12 = arith.subf %6, %11 : vector<8x8xf32>
    %13 = arith.mulf %12, %12 : vector<8x8xf32>
    %cst_7 = arith.constant dense<0.000000e+00> : vector<8xf32>
    %14 = vector.multi_reduction <add>, %13, %cst_7 [1] : vector<8x8xf32> to vector<8xf32>
    %15 = vector.shape_cast %14 : vector<8xf32> to vector<8x1xf32>
    %cst_8 = arith.constant 8.000000e+00 : f32
    %16 = vector.broadcast %cst_8 : f32 to vector<8x1xf32>
    %17 = arith.divf %15, %16 : vector<8x1xf32>
    %cst_9 = arith.constant 9.99999974E-6 : f32
    %18 = vector.broadcast %cst_9 : f32 to vector<8x1xf32>
    %19 = arith.addf %17, %18 : vector<8x1xf32>
    %20 = math.rsqrt %19 : vector<8x1xf32>
    %21 = vector.broadcast %20 : vector<8x1xf32> to vector<8x8xf32>
    %22 = arith.mulf %12, %21 : vector<8x8xf32>
    %c0_10 = arith.constant 0 : index
    %c0_11 = arith.constant 0 : index
    %23 = vector.load %arg4[%c0_10, %c0_11] : memref<8x8xf32, #tpu.memory_space<vmem>>, vector<8x8xf32>
    tpu.vector_store %arg4[%c0_10, %c0_11], %22 {strides = array<i32>} : memref<8x8xf32, #tpu.memory_space<vmem>>, vector<8x8xf32>,
    return
  }
  func.func @transform_0(%arg0: i32) -> (i32, i32) {
    %c0_i32 = arith.constant 0 : i32
    %c0_i32_0 = arith.constant 0 : i32
    %c0_i32_1 = arith.constant 0 : i32
    return %c0_i32, %c0_i32_0 : i32, i32
  }
  func.func @transform_1(%arg0: i32) -> (i32, i32) {
    %c0_i32 = arith.constant 0 : i32
    %c0_i32_0 = arith.constant 0 : i32
    %c0_i32_1 = arith.constant 0 : i32
    return %c0_i32, %c0_i32_0 : i32, i32
  }
  func.func @transform_2(%arg0: i32) -> (i32, i32) {
    %c0_i32 = arith.constant 0 : i32
    %c0_i32_0 = arith.constant 0 : i32
    %c0_i32_1 = arith.constant 0 : i32
    return %c0_i32, %c0_i32_0 : i32, i32
  }
  func.func @transform_3(%arg0: i32) -> (i32, i32) {
    %c0_i32 = arith.constant 0 : i32
    %c0_i32_0 = arith.constant 0 : i32
    %c0_i32_1 = arith.constant 0 : i32
    return %c0_i32, %c0_i32_0 : i32, i32
  }
}

module attributes {stable_mosaic.version = 11 : i64} {
  func.func @_fc_tanh_groupbn_kernel(%arg0: i32, %arg1: memref<32x32xf32, #tpu.memory_space<vmem>>, %arg2: memref<32x2xf32, #tpu.memory_space<vmem>>, %arg3: memref<32x1xf32, #tpu.memory_space<vmem>>, %arg4: memref<32x32xf32, #tpu.memory_space<vmem>>, %arg5: memref<32x2xf32, #tpu.memory_space<vmem>>) attributes {dimension_semantics = [#tpu.dimension_semantics<arbitrary>], iteration_bounds = array<i64: 1>, scalar_prefetch = 0 : i64, scratch_operands = 0 : i64, tpu.core_type = #tpu.core_type<tc>, window_params = [{pipeline_mode = #tpu.pipeline_mode<synchronous>, transform_indices = @transform_0, window_bounds = array<i64: 32, 32>}, {pipeline_mode = #tpu.pipeline_mode<synchronous>, transform_indices = @transform_1, window_bounds = array<i64: 32, 2>}, {pipeline_mode = #tpu.pipeline_mode<synchronous>, transform_indices = @transform_2, window_bounds = array<i64: 32, 1>}, {pipeline_mode = #tpu.pipeline_mode<synchronous>, transform_indices = @transform_3, window_bounds = array<i64: 32, 32>}, {pipeline_mode = #tpu.pipeline_mode<synchronous>, transform_indices = @transform_4, window_bounds = array<i64: 32, 2>}]} {
    %c0 = arith.constant 0 : index
    %c0_0 = arith.constant 0 : index
    %0 = vector.load %arg1[%c0, %c0_0] : memref<32x32xf32, #tpu.memory_space<vmem>>, vector<32x32xf32>
    %c0_1 = arith.constant 0 : index
    %c0_2 = arith.constant 0 : index
    %1 = vector.load %arg2[%c0_1, %c0_2] : memref<32x2xf32, #tpu.memory_space<vmem>>, vector<32x2xf32>
    %cst = arith.constant dense<0.000000e+00> : vector<32x2xf32>
    %2 = tpu.matmul %0, %1, %cst {dimension_numbers = #tpu.dot_dimension_numbers<[1], [0], [0], [1], [0, 0, 1, 1], [], []>} : vector<32x32xf32>, vector<32x2xf32>, vector<32x2xf32> -> vector<32x2xf32>
    %c0_3 = arith.constant 0 : index
    %c0_4 = arith.constant 0 : index
    %3 = vector.load %arg3[%c0_3, %c0_4] : memref<32x1xf32, #tpu.memory_space<vmem>>, vector<32x1xf32>
    %4 = vector.broadcast %3 : vector<32x1xf32> to vector<32x2xf32>
    %5 = arith.addf %2, %4 : vector<32x2xf32>
    %6 = math.tanh %5 : vector<32x2xf32>
    %c0_5 = arith.constant 0 : index
    %c0_6 = arith.constant 0 : index
    %7 = vector.load %arg4[%c0_5, %c0_6] : memref<32x32xf32, #tpu.memory_space<vmem>>, vector<32x32xf32>
    %cst_7 = arith.constant dense<0.000000e+00> : vector<32x2xf32>
    %8 = tpu.matmul %7, %6, %cst_7 {dimension_numbers = #tpu.dot_dimension_numbers<[1], [0], [0], [1], [0, 0, 1, 1], [], []>} : vector<32x32xf32>, vector<32x2xf32>, vector<32x2xf32> -> vector<32x2xf32>
    %cst_8 = arith.constant dense<0.000000e+00> : vector<32xf32>
    %9 = vector.multi_reduction <add>, %8, %cst_8 [1] : vector<32x2xf32> to vector<32xf32>
    %10 = vector.shape_cast %9 : vector<32xf32> to vector<32x1xf32>
    %cst_9 = arith.constant 2.000000e+00 : f32
    %11 = vector.broadcast %cst_9 : f32 to vector<32x1xf32>
    %12 = arith.divf %10, %11 : vector<32x1xf32>
    %13 = vector.broadcast %12 : vector<32x1xf32> to vector<32x2xf32>
    %14 = arith.subf %6, %13 : vector<32x2xf32>
    %15 = arith.mulf %14, %14 : vector<32x2xf32>
    %cst_10 = arith.constant dense<0.000000e+00> : vector<32x2xf32>
    %16 = tpu.matmul %7, %15, %cst_10 {dimension_numbers = #tpu.dot_dimension_numbers<[1], [0], [0], [1], [0, 0, 1, 1], [], []>} : vector<32x32xf32>, vector<32x2xf32>, vector<32x2xf32> -> vector<32x2xf32>
    %cst_11 = arith.constant dense<0.000000e+00> : vector<32xf32>
    %17 = vector.multi_reduction <add>, %16, %cst_11 [1] : vector<32x2xf32> to vector<32xf32>
    %18 = vector.shape_cast %17 : vector<32xf32> to vector<32x1xf32>
    %cst_12 = arith.constant 2.000000e+00 : f32
    %19 = vector.broadcast %cst_12 : f32 to vector<32x1xf32>
    %20 = arith.divf %18, %19 : vector<32x1xf32>
    %cst_13 = arith.constant 9.99999974E-6 : f32
    %21 = vector.broadcast %cst_13 : f32 to vector<32x1xf32>
    %22 = arith.addf %20, %21 : vector<32x1xf32>
    %23 = math.rsqrt %22 : vector<32x1xf32>
    %24 = vector.broadcast %23 : vector<32x1xf32> to vector<32x2xf32>
    %25 = arith.mulf %14, %24 : vector<32x2xf32>
    %c0_14 = arith.constant 0 : index
    %c0_15 = arith.constant 0 : index
    %26 = vector.load %arg5[%c0_14, %c0_15] : memref<32x2xf32, #tpu.memory_space<vmem>>, vector<32x2xf32>
    tpu.vector_store %arg5[%c0_14, %c0_15], %25 {strides = array<i32>} : memref<32x2xf32, #tpu.memory_space<vmem>>, vector<32x2xf32>,
    return
  }
  func.func @transform_0(%arg0: i32) -> (i32, i32) {
    %c0_i32 = arith.constant 0 : i32
    %c0_i32_0 = arith.constant 0 : i32
    %c0_i32_1 = arith.constant 0 : i32
    return %c0_i32, %c0_i32_0 : i32, i32
  }
  func.func @transform_1(%arg0: i32) -> (i32, i32) {
    %c0_i32 = arith.constant 0 : i32
    %c0_i32_0 = arith.constant 0 : i32
    %c0_i32_1 = arith.constant 0 : i32
    return %c0_i32, %c0_i32_0 : i32, i32
  }
  func.func @transform_2(%arg0: i32) -> (i32, i32) {
    %c0_i32 = arith.constant 0 : i32
    %c0_i32_0 = arith.constant 0 : i32
    %c0_i32_1 = arith.constant 0 : i32
    return %c0_i32, %c0_i32_0 : i32, i32
  }
  func.func @transform_3(%arg0: i32) -> (i32, i32) {
    %c0_i32 = arith.constant 0 : i32
    %c0_i32_0 = arith.constant 0 : i32
    %c0_i32_1 = arith.constant 0 : i32
    return %c0_i32, %c0_i32_0 : i32, i32
  }
  func.func @transform_4(%arg0: i32) -> (i32, i32) {
    %c0_i32 = arith.constant 0 : i32
    %c0_i32_0 = arith.constant 0 : i32
    %c0_i32_1 = arith.constant 0 : i32
    return %c0_i32, %c0_i32_0 : i32, i32
  }
}

module attributes {stable_mosaic.version = 11 : i64} {
  func.func @_gemm_tanh_bn_kernel(%arg0: i32, %arg1: memref<8x72xf32, #tpu.memory_space<vmem>>, %arg2: memref<72x50xf32, #tpu.memory_space<vmem>>, %arg3: memref<8x1xf32, #tpu.memory_space<vmem>>, %arg4: memref<8x50xf32, #tpu.memory_space<vmem>>) attributes {dimension_semantics = [#tpu.dimension_semantics<arbitrary>], iteration_bounds = array<i64: 1>, scalar_prefetch = 0 : i64, scratch_operands = 0 : i64, tpu.core_type = #tpu.core_type<tc>, window_params = [{pipeline_mode = #tpu.pipeline_mode<synchronous>, transform_indices = @transform_0, window_bounds = array<i64: 8, 72>}, {pipeline_mode = #tpu.pipeline_mode<synchronous>, transform_indices = @transform_1, window_bounds = array<i64: 72, 50>}, {pipeline_mode = #tpu.pipeline_mode<synchronous>, transform_indices = @transform_2, window_bounds = array<i64: 8, 1>}, {pipeline_mode = #tpu.pipeline_mode<synchronous>, transform_indices = @transform_3, window_bounds = array<i64: 8, 50>}]} {
    %c0 = arith.constant 0 : index
    %c0_0 = arith.constant 0 : index
    %0 = vector.load %arg1[%c0, %c0_0] : memref<8x72xf32, #tpu.memory_space<vmem>>, vector<8x72xf32>
    %c0_1 = arith.constant 0 : index
    %c0_2 = arith.constant 0 : index
    %1 = vector.load %arg2[%c0_1, %c0_2] : memref<72x50xf32, #tpu.memory_space<vmem>>, vector<72x50xf32>
    %cst = arith.constant dense<0.000000e+00> : vector<8x50xf32>
    %2 = tpu.matmul %0, %1, %cst {dimension_numbers = #tpu.dot_dimension_numbers<[1], [0], [0], [1], [0, 0, 1, 1], [], []>} : vector<8x72xf32>, vector<72x50xf32>, vector<8x50xf32> -> vector<8x50xf32>
    %c0_3 = arith.constant 0 : index
    %c0_4 = arith.constant 0 : index
    %3 = vector.load %arg3[%c0_3, %c0_4] : memref<8x1xf32, #tpu.memory_space<vmem>>, vector<8x1xf32>
    %4 = vector.broadcast %3 : vector<8x1xf32> to vector<8x50xf32>
    %5 = arith.addf %2, %4 : vector<8x50xf32>
    %6 = math.tanh %5 : vector<8x50xf32>
    %cst_5 = arith.constant dense<0.000000e+00> : vector<8xf32>
    %7 = vector.multi_reduction <add>, %6, %cst_5 [1] : vector<8x50xf32> to vector<8xf32>
    %8 = vector.shape_cast %7 : vector<8xf32> to vector<8x1xf32>
    %cst_6 = arith.constant 5.000000e+01 : f32
    %9 = vector.broadcast %cst_6 : f32 to vector<8x1xf32>
    %10 = arith.divf %8, %9 : vector<8x1xf32>
    %11 = vector.broadcast %10 : vector<8x1xf32> to vector<8x50xf32>
    %12 = arith.subf %6, %11 : vector<8x50xf32>
    %13 = arith.mulf %12, %12 : vector<8x50xf32>
    %cst_7 = arith.constant dense<0.000000e+00> : vector<8xf32>
    %14 = vector.multi_reduction <add>, %13, %cst_7 [1] : vector<8x50xf32> to vector<8xf32>
    %15 = vector.shape_cast %14 : vector<8xf32> to vector<8x1xf32>
    %cst_8 = arith.constant 5.000000e+01 : f32
    %16 = vector.broadcast %cst_8 : f32 to vector<8x1xf32>
    %17 = arith.divf %15, %16 : vector<8x1xf32>
    %cst_9 = arith.constant 9.99999974E-6 : f32
    %18 = vector.broadcast %cst_9 : f32 to vector<8x1xf32>
    %19 = arith.addf %17, %18 : vector<8x1xf32>
    %20 = math.rsqrt %19 : vector<8x1xf32>
    %21 = vector.broadcast %20 : vector<8x1xf32> to vector<8x50xf32>
    %22 = arith.mulf %12, %21 : vector<8x50xf32>
    %c0_10 = arith.constant 0 : index
    %c0_11 = arith.constant 0 : index
    %23 = vector.load %arg4[%c0_10, %c0_11] : memref<8x50xf32, #tpu.memory_space<vmem>>, vector<8x50xf32>
    tpu.vector_store %arg4[%c0_10, %c0_11], %22 {strides = array<i32>} : memref<8x50xf32, #tpu.memory_space<vmem>>, vector<8x50xf32>,
    return
  }
  func.func @transform_0(%arg0: i32) -> (i32, i32) {
    %c0_i32 = arith.constant 0 : i32
    %c0_i32_0 = arith.constant 0 : i32
    %c0_i32_1 = arith.constant 0 : i32
    return %c0_i32, %c0_i32_0 : i32, i32
  }
  func.func @transform_1(%arg0: i32) -> (i32, i32) {
    %c0_i32 = arith.constant 0 : i32
    %c0_i32_0 = arith.constant 0 : i32
    %c0_i32_1 = arith.constant 0 : i32
    return %c0_i32, %c0_i32_0 : i32, i32
  }
  func.func @transform_2(%arg0: i32) -> (i32, i32) {
    %c0_i32 = arith.constant 0 : i32
    %c0_i32_0 = arith.constant 0 : i32
    %c0_i32_1 = arith.constant 0 : i32
    return %c0_i32, %c0_i32_0 : i32, i32
  }
  func.func @transform_3(%arg0: i32) -> (i32, i32) {
    %c0_i32 = arith.constant 0 : i32
    %c0_i32_0 = arith.constant 0 : i32
    %c0_i32_1 = arith.constant 0 : i32
    return %c0_i32, %c0_i32_0 : i32, i32
  }
}

module attributes {stable_mosaic.version = 11 : i64} {
  func.func @_gemm_tanh_bn_kernel(%arg0: i32, %arg1: memref<4x200xf32, #tpu.memory_space<vmem>>, %arg2: memref<200x200xf32, #tpu.memory_space<vmem>>, %arg3: memref<4x1xf32, #tpu.memory_space<vmem>>, %arg4: memref<4x200xf32, #tpu.memory_space<vmem>>) attributes {dimension_semantics = [#tpu.dimension_semantics<arbitrary>], iteration_bounds = array<i64: 1>, scalar_prefetch = 0 : i64, scratch_operands = 0 : i64, tpu.core_type = #tpu.core_type<tc>, window_params = [{pipeline_mode = #tpu.pipeline_mode<synchronous>, transform_indices = @transform_0, window_bounds = array<i64: 4, 200>}, {pipeline_mode = #tpu.pipeline_mode<synchronous>, transform_indices = @transform_1, window_bounds = array<i64: 200, 200>}, {pipeline_mode = #tpu.pipeline_mode<synchronous>, transform_indices = @transform_2, window_bounds = array<i64: 4, 1>}, {pipeline_mode = #tpu.pipeline_mode<synchronous>, transform_indices = @transform_3, window_bounds = array<i64: 4, 200>}]} {
    %c0 = arith.constant 0 : index
    %c0_0 = arith.constant 0 : index
    %0 = vector.load %arg1[%c0, %c0_0] : memref<4x200xf32, #tpu.memory_space<vmem>>, vector<4x200xf32>
    %c0_1 = arith.constant 0 : index
    %c0_2 = arith.constant 0 : index
    %1 = vector.load %arg2[%c0_1, %c0_2] : memref<200x200xf32, #tpu.memory_space<vmem>>, vector<200x200xf32>
    %cst = arith.constant dense<0.000000e+00> : vector<4x200xf32>
    %2 = tpu.matmul %0, %1, %cst {dimension_numbers = #tpu.dot_dimension_numbers<[1], [0], [0], [1], [0, 0, 1, 1], [], []>} : vector<4x200xf32>, vector<200x200xf32>, vector<4x200xf32> -> vector<4x200xf32>
    %c0_3 = arith.constant 0 : index
    %c0_4 = arith.constant 0 : index
    %3 = vector.load %arg3[%c0_3, %c0_4] : memref<4x1xf32, #tpu.memory_space<vmem>>, vector<4x1xf32>
    %4 = vector.broadcast %3 : vector<4x1xf32> to vector<4x200xf32>
    %5 = arith.addf %2, %4 : vector<4x200xf32>
    %6 = math.tanh %5 : vector<4x200xf32>
    %cst_5 = arith.constant dense<0.000000e+00> : vector<4xf32>
    %7 = vector.multi_reduction <add>, %6, %cst_5 [1] : vector<4x200xf32> to vector<4xf32>
    %8 = vector.shape_cast %7 : vector<4xf32> to vector<4x1xf32>
    %cst_6 = arith.constant 2.000000e+02 : f32
    %9 = vector.broadcast %cst_6 : f32 to vector<4x1xf32>
    %10 = arith.divf %8, %9 : vector<4x1xf32>
    %11 = vector.broadcast %10 : vector<4x1xf32> to vector<4x200xf32>
    %12 = arith.subf %6, %11 : vector<4x200xf32>
    %13 = arith.mulf %12, %12 : vector<4x200xf32>
    %cst_7 = arith.constant dense<0.000000e+00> : vector<4xf32>
    %14 = vector.multi_reduction <add>, %13, %cst_7 [1] : vector<4x200xf32> to vector<4xf32>
    %15 = vector.shape_cast %14 : vector<4xf32> to vector<4x1xf32>
    %cst_8 = arith.constant 2.000000e+02 : f32
    %16 = vector.broadcast %cst_8 : f32 to vector<4x1xf32>
    %17 = arith.divf %15, %16 : vector<4x1xf32>
    %cst_9 = arith.constant 9.99999974E-6 : f32
    %18 = vector.broadcast %cst_9 : f32 to vector<4x1xf32>
    %19 = arith.addf %17, %18 : vector<4x1xf32>
    %20 = math.rsqrt %19 : vector<4x1xf32>
    %21 = vector.broadcast %20 : vector<4x1xf32> to vector<4x200xf32>
    %22 = arith.mulf %12, %21 : vector<4x200xf32>
    %c0_10 = arith.constant 0 : index
    %c0_11 = arith.constant 0 : index
    %23 = vector.load %arg4[%c0_10, %c0_11] : memref<4x200xf32, #tpu.memory_space<vmem>>, vector<4x200xf32>
    tpu.vector_store %arg4[%c0_10, %c0_11], %22 {strides = array<i32>} : memref<4x200xf32, #tpu.memory_space<vmem>>, vector<4x200xf32>,
    return
  }
  func.func @transform_0(%arg0: i32) -> (i32, i32) {
    %c0_i32 = arith.constant 0 : i32
    %c0_i32_0 = arith.constant 0 : i32
    %c0_i32_1 = arith.constant 0 : i32
    return %c0_i32, %c0_i32_0 : i32, i32
  }
  func.func @transform_1(%arg0: i32) -> (i32, i32) {
    %c0_i32 = arith.constant 0 : i32
    %c0_i32_0 = arith.constant 0 : i32
    %c0_i32_1 = arith.constant 0 : i32
    return %c0_i32, %c0_i32_0 : i32, i32
  }
  func.func @transform_2(%arg0: i32) -> (i32, i32) {
    %c0_i32 = arith.constant 0 : i32
    %c0_i32_0 = arith.constant 0 : i32
    %c0_i32_1 = arith.constant 0 : i32
    return %c0_i32, %c0_i32_0 : i32, i32
  }
  func.func @transform_3(%arg0: i32) -> (i32, i32) {
    %c0_i32 = arith.constant 0 : i32
    %c0_i32_0 = arith.constant 0 : i32
    %c0_i32_1 = arith.constant 0 : i32
    return %c0_i32, %c0_i32_0 : i32, i32
  }
}

module attributes {stable_mosaic.version = 11 : i64} {
  func.func @_gemm_tanh_bn_kernel(%arg0: i32, %arg1: memref<1x100xf32, #tpu.memory_space<vmem>>, %arg2: memref<100x800xf32, #tpu.memory_space<vmem>>, %arg3: memref<1x1xf32, #tpu.memory_space<vmem>>, %arg4: memref<1x800xf32, #tpu.memory_space<vmem>>) attributes {dimension_semantics = [#tpu.dimension_semantics<arbitrary>], iteration_bounds = array<i64: 1>, scalar_prefetch = 0 : i64, scratch_operands = 0 : i64, tpu.core_type = #tpu.core_type<tc>, window_params = [{pipeline_mode = #tpu.pipeline_mode<synchronous>, transform_indices = @transform_0, window_bounds = array<i64: 1, 100>}, {pipeline_mode = #tpu.pipeline_mode<synchronous>, transform_indices = @transform_1, window_bounds = array<i64: 100, 800>}, {pipeline_mode = #tpu.pipeline_mode<synchronous>, transform_indices = @transform_2, window_bounds = array<i64: 1, 1>}, {pipeline_mode = #tpu.pipeline_mode<synchronous>, transform_indices = @transform_3, window_bounds = array<i64: 1, 800>}]} {
    %c0 = arith.constant 0 : index
    %c0_0 = arith.constant 0 : index
    %0 = vector.load %arg1[%c0, %c0_0] : memref<1x100xf32, #tpu.memory_space<vmem>>, vector<1x100xf32>
    %c0_1 = arith.constant 0 : index
    %c0_2 = arith.constant 0 : index
    %1 = vector.load %arg2[%c0_1, %c0_2] : memref<100x800xf32, #tpu.memory_space<vmem>>, vector<100x800xf32>
    %cst = arith.constant dense<0.000000e+00> : vector<1x800xf32>
    %2 = tpu.matmul %0, %1, %cst {dimension_numbers = #tpu.dot_dimension_numbers<[1], [0], [0], [1], [0, 0, 1, 1], [], []>} : vector<1x100xf32>, vector<100x800xf32>, vector<1x800xf32> -> vector<1x800xf32>
    %c0_3 = arith.constant 0 : index
    %c0_4 = arith.constant 0 : index
    %3 = vector.load %arg3[%c0_3, %c0_4] : memref<1x1xf32, #tpu.memory_space<vmem>>, vector<1x1xf32>
    %4 = vector.broadcast %3 : vector<1x1xf32> to vector<1x800xf32>
    %5 = arith.addf %2, %4 : vector<1x800xf32>
    %6 = math.tanh %5 : vector<1x800xf32>
    %c0_5 = arith.constant 0 : index
    %c0_6 = arith.constant 0 : index
    %7 = vector.load %arg4[%c0_5, %c0_6] : memref<1x800xf32, #tpu.memory_space<vmem>>, vector<1x800xf32>
    tpu.vector_store %arg4[%c0_5, %c0_6], %6 {strides = array<i32>} : memref<1x800xf32, #tpu.memory_space<vmem>>, vector<1x800xf32>,
    return
  }
  func.func @transform_0(%arg0: i32) -> (i32, i32) {
    %c0_i32 = arith.constant 0 : i32
    %c0_i32_0 = arith.constant 0 : i32
    %c0_i32_1 = arith.constant 0 : i32
    return %c0_i32, %c0_i32_0 : i32, i32
  }
  func.func @transform_1(%arg0: i32) -> (i32, i32) {
    %c0_i32 = arith.constant 0 : i32
    %c0_i32_0 = arith.constant 0 : i32
    %c0_i32_1 = arith.constant 0 : i32
    return %c0_i32, %c0_i32_0 : i32, i32
  }
  func.func @transform_2(%arg0: i32) -> (i32, i32) {
    %c0_i32 = arith.constant 0 : i32
    %c0_i32_0 = arith.constant 0 : i32
    %c0_i32_1 = arith.constant 0 : i32
    return %c0_i32, %c0_i32_0 : i32, i32
  }
  func.func @transform_3(%arg0: i32) -> (i32, i32) {
    %c0_i32 = arith.constant 0 : i32
    %c0_i32_0 = arith.constant 0 : i32
    %c0_i32_1 = arith.constant 0 : i32
    return %c0_i32, %c0_i32_0 : i32, i32
  }
}

</mosaic_0001>

<llo_original>
// kernel: mtq_mnist_forward.7
$region0: #{mtq_mnist_forward.7}
  #allocation0 [shape = 'u32[]', space=smem, size = 0x4, offset = 0x4, fixed_abs, tag = 'smem constant byte address 0x4 - core index']
  #allocation1 [shape = 'u32[144,128]{1,0:T(1,128)}', space=vmem, size = 0x12000, scoped, tag = 'internal scratch']
  %s0 = inlined_call_operand.vmem [shape: f32[4,25], index: 0, kind: input, shape index: {}]
  %s1 = inlined_call_operand.vmem [shape: f32[25,200], index: 1, kind: input, shape index: {}]
  %s2 = inlined_call_operand.vmem [shape: f32[4,1], index: 2, kind: input, shape index: {}]
  %s3 = inlined_call_operand.vmem [shape: f32[4,200], index: 3, kind: output, shape index: {}]
  %s4 = sld [smem:[#allocation0]]
  $region22: #{mtq_mnist_forward.7} parent=0
    _
  %s6 = ssub.s32 1, %s4
  %s7 = scalar_select 0, %s6, %s4
  // Predicated region
  $region2: #{mtq_mnist_forward.7} parent=0 // pred_check
    _
  $region3: #{mtq_mnist_forward.7} parent=0 // pred_check_branch
    %9 = sbr.rel (0) target = $region5
  $region4: #{mtq_mnist_forward.7} parent=0 // pred_region
    _
  $region5: #{mtq_mnist_forward.7} parent=0 // pred_fallthru
    _
  // Predicated region
  $region6: #{mtq_mnist_forward.7} parent=0 // pred_check
    _
  $region7: #{mtq_mnist_forward.7} parent=0 // pred_check_branch
    %11 = sbr.rel (0) target = $region9
  $region8: #{mtq_mnist_forward.7} parent=0 // pred_region
    _
  $region9: #{mtq_mnist_forward.7} parent=0 // pred_fallthru
    _
  // Predicated region
  $region10: #{mtq_mnist_forward.7} parent=0 // pred_check
    _
  $region11: #{mtq_mnist_forward.7} parent=0 // pred_check_branch
    %13 = sbr.rel (0) target = $region13
  $region12: #{mtq_mnist_forward.7} parent=0 // pred_region
    _
  $region13: #{mtq_mnist_forward.7} parent=0 // pred_fallthru
    _
  %v14 = vld [vmem:[%s0] sm:$0xf]
  %v15 = vld [vmem:[%s1] sm:$0xff]
  %v16 = vld [vmem:[%s1 + $0x8] sm:$0xff]
  %v17 = vld [vmem:[%s1 + $0x10] sm:$0xff]
  %v18 = vld [vmem:[%s1 + $0x18] sm:$0xff]
  %v19 = vld [vmem:[%s1 + $0x20] sm:$0xff]
  %v20 = vld [vmem:[%s1 + $0x28] sm:$0xff]
  %v21 = vld [vmem:[%s1 + $0x30] sm:$0x1]
  %v22 = vld [vmem:[%s1 + $0x38] sm:$0x1]
  %v23 = vld [vmem:[%s2] sm:$0xf]
  %25 = vset.pattern.permute.xlu0 0
  %26 = vperm.xlu0 %25, %v23
  %v27 = vpop.permute.xlu0 %26
  %vm29 = vcmask 203776
  %v31 = vsel %vm29, %v14, 0
  %vm33 = vcmask 1040384
  %v35 = vsel %vm33, %v21, 0
  %v38 = vsel %vm33, %v22, 0
  %40 = vmatprep.subr.mxu0 %v16
  %41 = vmatpush1.msra.mxu0 %v15
  %42 = vmatprep.subr.mxu0 %v18
  %43 = vmatpush1.msra.mxu0 %v17
  %44 = vmatprep.subr.mxu0 %v20
  %45 = vmatpush1.msra.mxu0 %v19
  %46 = vmatprep.subr.mxu0 %v38
  %47 = vmatpush1.msra.mxu0 %v35
  %48 = vmatprep.subr.mxu0 0.0
  %49 = vmatpush1.msra.mxu0 0.0
  %50 = vmatprep.subr.mxu0 0.0
  %51 = vmatpush1.msra.mxu0 0.0
  %52 = vmatprep.subr.mxu0 0.0
  %53 = vmatpush1.msra.mxu0 0.0
  %54 = vmatprep.subr.mxu0 0.0
  %55 = vmatpush1.msra.mxu0 0.0
  %56 = vmatprep.subr.mxu0 0.0
  %57 = vmatpush1.msra.mxu0 0.0
  %58 = vmatprep.subr.mxu0 0.0
  %59 = vmatpush1.msra.mxu0 0.0
  %60 = vmatprep.subr.mxu0 0.0
  %61 = vmatpush1.msra.mxu0 0.0
  %62 = vmatprep.subr.mxu0 0.0
  %63 = vmatpush1.msra.mxu0 0.0
  %64 = vmatprep.subr.mxu0 0.0
  %65 = vmatpush1.msra.mxu0 0.0
  %66 = vmatprep.subr.mxu0 0.0
  %67 = vmatpush1.msra.mxu0 0.0
  %68 = vmatprep.subr.mxu0 0.0
  %69 = vmatpush1.msra.mxu0 0.0
  %70 = vmatprep.subr.mxu0 0.0
  %71 = vmatpush1.msra.mxu0 0.0
  %72 = vmatprep.subr.mxu0 0.0
  %73 = vmatpush1.msra.mxu0 0.0
  %74 = vmatprep.subr.mxu0 0.0
  %75 = vmatpush1.msra.mxu0 0.0
  %76 = vmatprep.subr.mxu0 0.0
  %77 = vmatpush1.msra.mxu0 0.0
  %78 = vmatprep.subr.mxu0 0.0
  %79 = vmatpush1.msra.mxu0 0.0
  %80 = vmatprep.subr.mxu0 0.0
  %81 = vmatpush1.msra.mxu0 0.0
  %82 = vmatprep.subr.mxu0 0.0
  %83 = vmatpush1.msra.mxu0 0.0
  %84 = vmatprep.subr.mxu0 0.0
  %85 = vmatpush1.msra.mxu0 0.0
  %86 = vmatprep.subr.mxu0 0.0
  %87 = vmatpush1.msra.mxu0 0.0
  %88 = vmatprep.subr.mxu0 0.0
  %89 = vmatpush1.msra.mxu0 0.0
  %90 = vmatprep.subr.mxu0 0.0
  %91 = vmatpush1.msra.mxu0 0.0
  %92 = vmatprep.subr.mxu0 0.0
  %93 = vmatpush1.msra.mxu0 0.0
  %94 = vmatprep.subr.mxu0 0.0
  %95 = vmatpush1.msra.mxu0 0.0
  %96 = vmatprep.subr.mxu0 0.0
  %97 = vmatpush1.msra.mxu0 0.0
  %98 = vmatprep.subr.mxu0 0.0
  %99 = vmatpush1.msra.mxu0 0.0
  %100 = vmatprep.subr.mxu0 0.0
  %101 = vmatpush1.msra.mxu0 0.0
  %102 = vmatprep.subr.mxu0 0.0
  %103 = vmatpush1.msra.mxu0 0.0
  %104 = vmatprep.mubr.f32.mxu0 0.0
  %105 = vmatmul.mubr.f32.gmra.mrb[0].mxu0 %v31
  %v106 = vpop.f32.mrb[0].mxu0
  %v107 = vadd.f32 %v27, %v106
  %v108 = vpop.f32.mrb[0].mxu0
  %v109 = vadd.f32 %v27, %v108
  %110 = vdwg.mxu0
  %v111 = vtanh.pop %v107
  %v112 = vtanh.pop %v109
  %vm113 = vcmask 1043456
  %v114 = vsel %vm113, %v111, 0.0
  %vm115 = vcmask 584704
  %v116 = vsel %vm115, %v112, 0.0
  %v117 = vadd.f32 %v114, %v116
  %118 = vadd.xlane.f32.xlu0 %v117
  %v119 = vpop.xlane.xlu0 %118
  %v120 = vrcp.pop 200.0
  %v121 = vmul.f32 %v119, %v120
  %v122 = vsub.f32 %v111, %v121
  %v123 = vsub.f32 %v112, %v121
  %v124 = vmul.f32 %v122, %v122
  %v125 = vmul.f32 %v123, %v123
  %v126 = vsel %vm113, %v124, 0.0
  %v127 = vsel %vm115, %v125, 0.0
  %v128 = vadd.f32 %v126, %v127
  %129 = vadd.xlane.f32.xlu0 %v128
  %v130 = vpop.xlane.xlu0 %129
  %v131 = vmul.f32 %v130, %v120
  %v132 = vadd.f32 %v131, 1e-05
  %v133 = vrsqrt.pop %v132
  %v134 = vmul.f32 %v122, %v133
  %v135 = vmul.f32 %v123, %v133
  %v138 = vcombine.low %v134, %v135
  %vm140 = vcmask 588804
  %vm141 = vmor %vm140, %vm113
  %142 = vst.msk [vmem:[%s3] sm:$0xff] %vm141, %v138
  // Predicated region
  $region14: #{mtq_mnist_forward.7} parent=0 // pred_check
    _
  $region15: #{mtq_mnist_forward.7} parent=0 // pred_check_branch
    %144 = sbr.rel (0) target = $region17
  $region16: #{mtq_mnist_forward.7} parent=0 // pred_region
    _
  $region17: #{mtq_mnist_forward.7} parent=0 // pred_fallthru
    _
  // Predicated region
  $region18: #{mtq_mnist_forward.7} parent=0 // pred_check
    _
  $region19: #{mtq_mnist_forward.7} parent=0 // pred_check_branch
    %146 = sbr.rel (0) target = $region21
  $region20: #{mtq_mnist_forward.7} parent=0 // pred_region
    _
  $region21: #{mtq_mnist_forward.7} parent=0 // pred_fallthru
    _

// kernel: mtq_mnist_forward.8
$region0: #{mtq_mnist_forward.8}
  #allocation0 [shape = 'u32[]', space=smem, size = 0x4, offset = 0x4, fixed_abs, tag = 'smem constant byte address 0x4 - core index']
  #allocation1 [shape = 'u32[144,128]{1,0:T(1,128)}', space=vmem, size = 0x12000, scoped, tag = 'internal scratch']
  %s0 = inlined_call_operand.vmem [shape: f32[8,100], index: 0, kind: input, shape index: {}]
  %s1 = inlined_call_operand.vmem [shape: f32[100,50], index: 1, kind: input, shape index: {}]
  %s2 = inlined_call_operand.vmem [shape: f32[8,1], index: 2, kind: input, shape index: {}]
  %s3 = inlined_call_operand.vmem [shape: f32[8,50], index: 3, kind: output, shape index: {}]
  %s4 = sld [smem:[#allocation0]]
  $region22: #{mtq_mnist_forward.8} parent=0
    _
  %s6 = ssub.s32 1, %s4
  %s7 = scalar_select 0, %s6, %s4
  // Predicated region
  $region2: #{mtq_mnist_forward.8} parent=0 // pred_check
    _
  $region3: #{mtq_mnist_forward.8} parent=0 // pred_check_branch
    %9 = sbr.rel (0) target = $region5
  $region4: #{mtq_mnist_forward.8} parent=0 // pred_region
    _
  $region5: #{mtq_mnist_forward.8} parent=0 // pred_fallthru
    _
  // Predicated region
  $region6: #{mtq_mnist_forward.8} parent=0 // pred_check
    _
  $region7: #{mtq_mnist_forward.8} parent=0 // pred_check_branch
    %11 = sbr.rel (0) target = $region9
  $region8: #{mtq_mnist_forward.8} parent=0 // pred_region
    _
  $region9: #{mtq_mnist_forward.8} parent=0 // pred_fallthru
    _
  // Predicated region
  $region10: #{mtq_mnist_forward.8} parent=0 // pred_check
    _
  $region11: #{mtq_mnist_forward.8} parent=0 // pred_check_branch
    %13 = sbr.rel (0) target = $region13
  $region12: #{mtq_mnist_forward.8} parent=0 // pred_region
    _
  $region13: #{mtq_mnist_forward.8} parent=0 // pred_fallthru
    _
  %v14 = vld [vmem:[%s0] sm:$0xff]
  %v15 = vld [vmem:[%s1] sm:$0xff]
  %v16 = vld [vmem:[%s1 + $0x8] sm:$0xff]
  %v17 = vld [vmem:[%s1 + $0x10] sm:$0xff]
  %v18 = vld [vmem:[%s1 + $0x18] sm:$0xff]
  %v19 = vld [vmem:[%s1 + $0x20] sm:$0xff]
  %v20 = vld [vmem:[%s1 + $0x28] sm:$0xff]
  %v21 = vld [vmem:[%s1 + $0x30] sm:$0xff]
  %v22 = vld [vmem:[%s1 + $0x38] sm:$0xff]
  %v23 = vld [vmem:[%s1 + $0x40] sm:$0xff]
  %v24 = vld [vmem:[%s1 + $0x48] sm:$0xff]
  %v25 = vld [vmem:[%s1 + $0x50] sm:$0xff]
  %v26 = vld [vmem:[%s1 + $0x58] sm:$0xff]
  %v27 = vld [vmem:[%s1 + $0x60] sm:$0xf]
  %v28 = vld [vmem:[%s2] sm:$0xff]
  %30 = vset.pattern.permute.xlu0 0
  %31 = vperm.xlu0 %30, %v28
  %v32 = vpop.permute.xlu0 %31
  %vm34 = vcmask 818176
  %v36 = vsel %vm34, %v14, 0
  %vm38 = vcmask 1043456
  %v40 = vsel %vm38, %v27, 0
  %42 = vmatprep.subr.mxu0 0.0
  %43 = vmatpush1.msra.mxu0 %v15
  %44 = vmatprep.subr.mxu0 0.0
  %45 = vmatpush1.msra.mxu0 %v16
  %46 = vmatprep.subr.mxu0 0.0
  %47 = vmatpush1.msra.mxu0 %v17
  %48 = vmatprep.subr.mxu0 0.0
  %49 = vmatpush1.msra.mxu0 %v18
  %50 = vmatprep.subr.mxu0 0.0
  %51 = vmatpush1.msra.mxu0 %v19
  %52 = vmatprep.subr.mxu0 0.0
  %53 = vmatpush1.msra.mxu0 %v20
  %54 = vmatprep.subr.mxu0 0.0
  %55 = vmatpush1.msra.mxu0 %v21
  %56 = vmatprep.subr.mxu0 0.0
  %57 = vmatpush1.msra.mxu0 %v22
  %58 = vmatprep.subr.mxu0 0.0
  %59 = vmatpush1.msra.mxu0 %v23
  %60 = vmatprep.subr.mxu0 0.0
  %61 = vmatpush1.msra.mxu0 %v24
  %62 = vmatprep.subr.mxu0 0.0
  %63 = vmatpush1.msra.mxu0 %v25
  %64 = vmatprep.subr.mxu0 0.0
  %65 = vmatpush1.msra.mxu0 %v26
  %66 = vmatprep.subr.mxu0 0.0
  %67 = vmatpush1.msra.mxu0 %v40
  %68 = vmatprep.subr.mxu0 0.0
  %69 = vmatpush1.msra.mxu0 0.0
  %70 = vmatprep.subr.mxu0 0.0
  %71 = vmatpush1.msra.mxu0 0.0
  %72 = vmatprep.subr.mxu0 0.0
  %73 = vmatpush1.msra.mxu0 0.0
  %74 = vmatprep.subr.mxu0 0.0
  %75 = vmatpush1.msra.mxu0 0.0
  %76 = vmatprep.subr.mxu0 0.0
  %77 = vmatpush1.msra.mxu0 0.0
  %78 = vmatprep.subr.mxu0 0.0
  %79 = vmatpush1.msra.mxu0 0.0
  %80 = vmatprep.subr.mxu0 0.0
  %81 = vmatpush1.msra.mxu0 0.0
  %82 = vmatprep.subr.mxu0 0.0
  %83 = vmatpush1.msra.mxu0 0.0
  %84 = vmatprep.subr.mxu0 0.0
  %85 = vmatpush1.msra.mxu0 0.0
  %86 = vmatprep.subr.mxu0 0.0
  %87 = vmatpush1.msra.mxu0 0.0
  %88 = vmatprep.subr.mxu0 0.0
  %89 = vmatpush1.msra.mxu0 0.0
  %90 = vmatprep.subr.mxu0 0.0
  %91 = vmatpush1.msra.mxu0 0.0
  %92 = vmatprep.subr.mxu0 0.0
  %93 = vmatpush1.msra.mxu0 0.0
  %94 = vmatprep.subr.mxu0 0.0
  %95 = vmatpush1.msra.mxu0 0.0
  %96 = vmatprep.subr.mxu0 0.0
  %97 = vmatpush1.msra.mxu0 0.0
  %98 = vmatprep.subr.mxu0 0.0
  %99 = vmatpush1.msra.mxu0 0.0
  %100 = vmatprep.subr.mxu0 0.0
  %101 = vmatpush1.msra.mxu0 0.0
  %102 = vmatprep.subr.mxu0 0.0
  %103 = vmatpush1.msra.mxu0 0.0
  %104 = vmatprep.subr.mxu0 0.0
  %105 = vmatpush1.msra.mxu0 0.0
  %106 = vmatprep.mubr.f32.mxu0 0.0
  %107 = vmatmul.mubr.f32.gmra.mrb[0].mxu0 %v36
  %v108 = vpop.f32.mrb[0].mxu0
  %v109 = vadd.f32 %v32, %v108
  %v110 = vpop.f32.mrb[0].mxu0
  %111 = vdwg.mxu0
  %v112 = vtanh.pop %v109
  %vm113 = vcmask 408576
  %v114 = vsel %vm113, %v112, 0.0
  %115 = vadd.xlane.f32.xlu0 %v114
  %v116 = vpop.xlane.xlu0 %115
  %v117 = vrcp.pop 50.0
  %v118 = vmul.f32 %v116, %v117
  %v119 = vsub.f32 %v112, %v118
  %v120 = vmul.f32 %v119, %v119
  %v121 = vsel %vm113, %v120, 0.0
  %122 = vadd.xlane.f32.xlu0 %v121
  %v123 = vpop.xlane.xlu0 %122
  %v124 = vmul.f32 %v123, %v117
  %v125 = vadd.f32 %v124, 1e-05
  %v126 = vrsqrt.pop %v125
  %v127 = vmul.f32 %v119, %v126
  %128 = vst.msk [vmem:[%s3] sm:$0xff] %vm113, %v127
  // Predicated region
  $region14: #{mtq_mnist_forward.8} parent=0 // pred_check
    _
  $region15: #{mtq_mnist_forward.8} parent=0 // pred_check_branch
    %130 = sbr.rel (0) target = $region17
  $region16: #{mtq_mnist_forward.8} parent=0 // pred_region
    _
  $region17: #{mtq_mnist_forward.8} parent=0 // pred_fallthru
    _
  // Predicated region
  $region18: #{mtq_mnist_forward.8} parent=0 // pred_check
    _
  $region19: #{mtq_mnist_forward.8} parent=0 // pred_check_branch
    %132 = sbr.rel (0) target = $region21
  $region20: #{mtq_mnist_forward.8} parent=0 // pred_region
    _
  $region21: #{mtq_mnist_forward.8} parent=0 // pred_fallthru
    _

// kernel: mtq_mnist_forward.9
$region0: #{mtq_mnist_forward.9}
  #allocation0 [shape = 'u32[]', space=smem, size = 0x4, offset = 0x4, fixed_abs, tag = 'smem constant byte address 0x4 - core index']
  #allocation1 [shape = 'u32[144,128]{1,0:T(1,128)}', space=vmem, size = 0x12000, scoped, tag = 'internal scratch']
  %s0 = inlined_call_operand.vmem [shape: f32[8,72], index: 0, kind: input, shape index: {}]
  %s1 = inlined_call_operand.vmem [shape: f32[72,8], index: 1, kind: input, shape index: {}]
  %s2 = inlined_call_operand.vmem [shape: f32[8,1], index: 2, kind: input, shape index: {}]
  %s3 = inlined_call_operand.vmem [shape: f32[8,8], index: 3, kind: output, shape index: {}]
  %s4 = sld [smem:[#allocation0]]
  $region22: #{mtq_mnist_forward.9} parent=0
    _
  %s6 = ssub.s32 1, %s4
  %s7 = scalar_select 0, %s6, %s4
  // Predicated region
  $region2: #{mtq_mnist_forward.9} parent=0 // pred_check
    _
  $region3: #{mtq_mnist_forward.9} parent=0 // pred_check_branch
    %9 = sbr.rel (0) target = $region5
  $region4: #{mtq_mnist_forward.9} parent=0 // pred_region
    _
  $region5: #{mtq_mnist_forward.9} parent=0 // pred_fallthru
    _
  // Predicated region
  $region6: #{mtq_mnist_forward.9} parent=0 // pred_check
    _
  $region7: #{mtq_mnist_forward.9} parent=0 // pred_check_branch
    %11 = sbr.rel (0) target = $region9
  $region8: #{mtq_mnist_forward.9} parent=0 // pred_region
    _
  $region9: #{mtq_mnist_forward.9} parent=0 // pred_fallthru
    _
  // Predicated region
  $region10: #{mtq_mnist_forward.9} parent=0 // pred_check
    _
  $region11: #{mtq_mnist_forward.9} parent=0 // pred_check_branch
    %13 = sbr.rel (0) target = $region13
  $region12: #{mtq_mnist_forward.9} parent=0 // pred_region
    _
  $region13: #{mtq_mnist_forward.9} parent=0 // pred_fallthru
    _
  %v14 = vld [vmem:[%s0] sm:$0xff]
  %v15 = vld [vmem:[%s1] sm:$0xff]
  %v16 = vld [vmem:[%s1 + $0x8] sm:$0xff]
  %v17 = vld [vmem:[%s1 + $0x10] sm:$0xff]
  %v18 = vld [vmem:[%s1 + $0x18] sm:$0xff]
  %v19 = vld [vmem:[%s1 + $0x20] sm:$0xff]
  %v20 = vld [vmem:[%s1 + $0x28] sm:$0xff]
  %v21 = vld [vmem:[%s1 + $0x30] sm:$0xff]
  %v22 = vld [vmem:[%s1 + $0x38] sm:$0xff]
  %v23 = vld [vmem:[%s1 + $0x40] sm:$0xff]
  %v24 = vld [vmem:[%s2] sm:$0xff]
  %26 = vset.pattern.permute.xlu0 0
  %27 = vperm.xlu0 %26, %v24
  %v28 = vpop.permute.xlu0 %27
  %vm30 = vcmask 588800
  %v32 = vsel %vm30, %v14, 0
  %34 = vmatprep.subr.mxu0 0.0
  %35 = vmatpush1.msra.mxu0 %v15
  %36 = vmatprep.subr.mxu0 0.0
  %37 = vmatpush1.msra.mxu0 %v16
  %38 = vmatprep.subr.mxu0 0.0
  %39 = vmatpush1.msra.mxu0 %v17
  %40 = vmatprep.subr.mxu0 0.0
  %41 = vmatpush1.msra.mxu0 %v18
  %42 = vmatprep.subr.mxu0 0.0
  %43 = vmatpush1.msra.mxu0 %v19
  %44 = vmatprep.subr.mxu0 0.0
  %45 = vmatpush1.msra.mxu0 %v20
  %46 = vmatprep.subr.mxu0 0.0
  %47 = vmatpush1.msra.mxu0 %v21
  %48 = vmatprep.subr.mxu0 0.0
  %49 = vmatpush1.msra.mxu0 %v22
  %50 = vmatprep.subr.mxu0 0.0
  %51 = vmatpush1.msra.mxu0 %v23
  %52 = vmatprep.subr.mxu0 0.0
  %53 = vmatpush1.msra.mxu0 0.0
  %54 = vmatprep.subr.mxu0 0.0
  %55 = vmatpush1.msra.mxu0 0.0
  %56 = vmatprep.subr.mxu0 0.0
  %57 = vmatpush1.msra.mxu0 0.0
  %58 = vmatprep.subr.mxu0 0.0
  %59 = vmatpush1.msra.mxu0 0.0
  %60 = vmatprep.subr.mxu0 0.0
  %61 = vmatpush1.msra.mxu0 0.0
  %62 = vmatprep.subr.mxu0 0.0
  %63 = vmatpush1.msra.mxu0 0.0
  %64 = vmatprep.subr.mxu0 0.0
  %65 = vmatpush1.msra.mxu0 0.0
  %66 = vmatprep.subr.mxu0 0.0
  %67 = vmatpush1.msra.mxu0 0.0
  %68 = vmatprep.subr.mxu0 0.0
  %69 = vmatpush1.msra.mxu0 0.0
  %70 = vmatprep.subr.mxu0 0.0
  %71 = vmatpush1.msra.mxu0 0.0
  %72 = vmatprep.subr.mxu0 0.0
  %73 = vmatpush1.msra.mxu0 0.0
  %74 = vmatprep.subr.mxu0 0.0
  %75 = vmatpush1.msra.mxu0 0.0
  %76 = vmatprep.subr.mxu0 0.0
  %77 = vmatpush1.msra.mxu0 0.0
  %78 = vmatprep.subr.mxu0 0.0
  %79 = vmatpush1.msra.mxu0 0.0
  %80 = vmatprep.subr.mxu0 0.0
  %81 = vmatpush1.msra.mxu0 0.0
  %82 = vmatprep.subr.mxu0 0.0
  %83 = vmatpush1.msra.mxu0 0.0
  %84 = vmatprep.subr.mxu0 0.0
  %85 = vmatpush1.msra.mxu0 0.0
  %86 = vmatprep.subr.mxu0 0.0
  %87 = vmatpush1.msra.mxu0 0.0
  %88 = vmatprep.subr.mxu0 0.0
  %89 = vmatpush1.msra.mxu0 0.0
  %90 = vmatprep.subr.mxu0 0.0
  %91 = vmatpush1.msra.mxu0 0.0
  %92 = vmatprep.subr.mxu0 0.0
  %93 = vmatpush1.msra.mxu0 0.0
  %94 = vmatprep.subr.mxu0 0.0
  %95 = vmatpush1.msra.mxu0 0.0
  %96 = vmatprep.subr.mxu0 0.0
  %97 = vmatpush1.msra.mxu0 0.0
  %98 = vmatprep.mubr.f32.mxu0 0.0
  %99 = vmatmul.mubr.f32.gmra.mrb[0].mxu0 %v32
  %v100 = vpop.f32.mrb[0].mxu0
  %v101 = vadd.f32 %v28, %v100
  %v102 = vpop.f32.mrb[0].mxu0
  %103 = vdwg.mxu0
  %v104 = vtanh.pop %v101
  %vm105 = vcmask 64512
  %v106 = vsel %vm105, %v104, 0.0
  %107 = vadd.xlane.f32.xlu0 %v106
  %v108 = vpop.xlane.xlu0 %107
  %v109 = vrcp.pop 8.0
  %v110 = vmul.f32 %v108, %v109
  %v111 = vsub.f32 %v104, %v110
  %v112 = vmul.f32 %v111, %v111
  %v113 = vsel %vm105, %v112, 0.0
  %114 = vadd.xlane.f32.xlu0 %v113
  %v115 = vpop.xlane.xlu0 %114
  %v116 = vmul.f32 %v115, %v109
  %v117 = vadd.f32 %v116, 1e-05
  %v118 = vrsqrt.pop %v117
  %v119 = vmul.f32 %v111, %v118
  %120 = vst.msk [vmem:[%s3] sm:$0xff] %vm105, %v119
  // Predicated region
  $region14: #{mtq_mnist_forward.9} parent=0 // pred_check
    _
  $region15: #{mtq_mnist_forward.9} parent=0 // pred_check_branch
    %122 = sbr.rel (0) target = $region17
  $region16: #{mtq_mnist_forward.9} parent=0 // pred_region
    _
  $region17: #{mtq_mnist_forward.9} parent=0 // pred_fallthru
    _
  // Predicated region
  $region18: #{mtq_mnist_forward.9} parent=0 // pred_check
    _
  $region19: #{mtq_mnist_forward.9} parent=0 // pred_check_branch
    %124 = sbr.rel (0) target = $region21
  $region20: #{mtq_mnist_forward.9} parent=0 // pred_region
    _
  $region21: #{mtq_mnist_forward.9} parent=0 // pred_fallthru
    _

// kernel: mtq_mnist_forward.10
$region0: #{mtq_mnist_forward.10}
  #allocation0 [shape = 'u32[]', space=smem, size = 0x4, offset = 0x4, fixed_abs, tag = 'smem constant byte address 0x4 - core index']
  #allocation1 [shape = 'u32[144,128]{1,0:T(1,128)}', space=vmem, size = 0x12000, scoped, tag = 'internal scratch']
  %s0 = inlined_call_operand.vmem [shape: f32[32,32], index: 0, kind: input, shape index: {}]
  %s1 = inlined_call_operand.vmem [shape: f32[32,2], index: 1, kind: input, shape index: {}]
  %s2 = inlined_call_operand.vmem [shape: f32[32,1], index: 2, kind: input, shape index: {}]
  %s3 = inlined_call_operand.vmem [shape: f32[32,32], index: 3, kind: input, shape index: {}]
  %s4 = inlined_call_operand.vmem [shape: f32[32,2], index: 4, kind: output, shape index: {}]
  %s5 = sld [smem:[#allocation0]]
  $region26: #{mtq_mnist_forward.10} parent=0
    _
  %s7 = ssub.s32 1, %s5
  %s8 = scalar_select 0, %s7, %s5
  // Predicated region
  $region2: #{mtq_mnist_forward.10} parent=0 // pred_check
    _
  $region3: #{mtq_mnist_forward.10} parent=0 // pred_check_branch
    %10 = sbr.rel (0) target = $region5
  $region4: #{mtq_mnist_forward.10} parent=0 // pred_region
    _
  $region5: #{mtq_mnist_forward.10} parent=0 // pred_fallthru
    _
  // Predicated region
  $region6: #{mtq_mnist_forward.10} parent=0 // pred_check
    _
  $region7: #{mtq_mnist_forward.10} parent=0 // pred_check_branch
    %12 = sbr.rel (0) target = $region9
  $region8: #{mtq_mnist_forward.10} parent=0 // pred_region
    _
  $region9: #{mtq_mnist_forward.10} parent=0 // pred_fallthru
    _
  // Predicated region
  $region10: #{mtq_mnist_forward.10} parent=0 // pred_check
    _
  $region11: #{mtq_mnist_forward.10} parent=0 // pred_check_branch
    %14 = sbr.rel (0) target = $region13
  $region12: #{mtq_mnist_forward.10} parent=0 // pred_region
    _
  $region13: #{mtq_mnist_forward.10} parent=0 // pred_fallthru
    _
  // Predicated region
  $region14: #{mtq_mnist_forward.10} parent=0 // pred_check
    _
  $region15: #{mtq_mnist_forward.10} parent=0 // pred_check_branch
    %16 = sbr.rel (0) target = $region17
  $region16: #{mtq_mnist_forward.10} parent=0 // pred_region
    _
  $region17: #{mtq_mnist_forward.10} parent=0 // pred_fallthru
    _
  %v17 = vld [vmem:[%s0] sm:$0xff]
  %v18 = vld [vmem:[%s0 + $0x8] sm:$0xff]
  %v19 = vld [vmem:[%s0 + $0x10] sm:$0xff]
  %v20 = vld [vmem:[%s0 + $0x18] sm:$0xff]
  %v21 = vld [vmem:[%s1] sm:$0xff]
  %v22 = vld [vmem:[%s1 + $0x8] sm:$0xff]
  %v23 = vld [vmem:[%s1 + $0x10] sm:$0xff]
  %v24 = vld [vmem:[%s1 + $0x18] sm:$0xff]
  %v25 = vld [vmem:[%s2] sm:$0xff]
  %v26 = vld [vmem:[%s2 + $0x8] sm:$0xff]
  %v27 = vld [vmem:[%s2 + $0x10] sm:$0xff]
  %v28 = vld [vmem:[%s2 + $0x18] sm:$0xff]
  %30 = vset.pattern.permute.xlu0 0
  %31 = vperm.xlu0 %30, %v25
  %v32 = vpop.permute.xlu0 %31
  %35 = vset.pattern.permute.xlu0 0
  %36 = vperm.xlu0 %35, %v26
  %v37 = vpop.permute.xlu0 %36
  %40 = vset.pattern.permute.xlu0 0
  %41 = vperm.xlu0 %40, %v27
  %v42 = vpop.permute.xlu0 %41
  %45 = vset.pattern.permute.xlu0 0
  %46 = vperm.xlu0 %45, %v28
  %v47 = vpop.permute.xlu0 %46
  %vm49 = vcmask 261120
  %v51 = vsel %vm49, %v17, 0
  %v54 = vsel %vm49, %v18, 0
  %v57 = vsel %vm49, %v19, 0
  %v60 = vsel %vm49, %v20, 0
  %62 = vmatprep.subr.mxu0 0.0
  %63 = vmatpush1.msra.mxu0 %v21
  %64 = vmatprep.subr.mxu0 0.0
  %65 = vmatpush1.msra.mxu0 %v22
  %66 = vmatprep.subr.mxu0 0.0
  %67 = vmatpush1.msra.mxu0 %v23
  %68 = vmatprep.subr.mxu0 0.0
  %69 = vmatpush1.msra.mxu0 %v24
  %70 = vmatprep.subr.mxu0 0.0
  %71 = vmatpush1.msra.mxu0 0.0
  %72 = vmatprep.subr.mxu0 0.0
  %73 = vmatpush1.msra.mxu0 0.0
  %74 = vmatprep.subr.mxu0 0.0
  %75 = vmatpush1.msra.mxu0 0.0
  %76 = vmatprep.subr.mxu0 0.0
  %77 = vmatpush1.msra.mxu0 0.0
  %78 = vmatprep.subr.mxu0 0.0
  %79 = vmatpush1.msra.mxu0 0.0
  %80 = vmatprep.subr.mxu0 0.0
  %81 = vmatpush1.msra.mxu0 0.0
  %82 = vmatprep.subr.mxu0 0.0
  %83 = vmatpush1.msra.mxu0 0.0
  %84 = vmatprep.subr.mxu0 0.0
  %85 = vmatpush1.msra.mxu0 0.0
  %86 = vmatprep.subr.mxu0 0.0
  %87 = vmatpush1.msra.mxu0 0.0
  %88 = vmatprep.subr.mxu0 0.0
  %89 = vmatpush1.msra.mxu0 0.0
  %90 = vmatprep.subr.mxu0 0.0
  %91 = vmatpush1.msra.mxu0 0.0
  %92 = vmatprep.subr.mxu0 0.0
  %93 = vmatpush1.msra.mxu0 0.0
  %94 = vmatprep.subr.mxu0 0.0
  %95 = vmatpush1.msra.mxu0 0.0
  %96 = vmatprep.subr.mxu0 0.0
  %97 = vmatpush1.msra.mxu0 0.0
  %98 = vmatprep.subr.mxu0 0.0
  %99 = vmatpush1.msra.mxu0 0.0
  %100 = vmatprep.subr.mxu0 0.0
  %101 = vmatpush1.msra.mxu0 0.0
  %102 = vmatprep.subr.mxu0 0.0
  %103 = vmatpush1.msra.mxu0 0.0
  %104 = vmatprep.subr.mxu0 0.0
  %105 = vmatpush1.msra.mxu0 0.0
  %106 = vmatprep.subr.mxu0 0.0
  %107 = vmatpush1.msra.mxu0 0.0
  %108 = vmatprep.subr.mxu0 0.0
  %109 = vmatpush1.msra.mxu0 0.0
  %110 = vmatprep.subr.mxu0 0.0
  %111 = vmatpush1.msra.mxu0 0.0
  %112 = vmatprep.subr.mxu0 0.0
  %113 = vmatpush1.msra.mxu0 0.0
  %114 = vmatprep.subr.mxu0 0.0
  %115 = vmatpush1.msra.mxu0 0.0
  %116 = vmatprep.subr.mxu0 0.0
  %117 = vmatpush1.msra.mxu0 0.0
  %118 = vmatprep.subr.mxu0 0.0
  %119 = vmatpush1.msra.mxu0 0.0
  %120 = vmatprep.subr.mxu0 0.0
  %121 = vmatpush1.msra.mxu0 0.0
  %122 = vmatprep.subr.mxu0 0.0
  %123 = vmatpush1.msra.mxu0 0.0
  %124 = vmatprep.subr.mxu0 0.0
  %125 = vmatpush1.msra.mxu0 0.0
  %126 = vmatprep.mubr.f32.mxu0 0.0
  %127 = vmatmul.mubr.f32.gmra.mrb[0].mxu0 %v51
  %v128 = vpop.f32.mrb[0].mxu0
  %v129 = vadd.f32 %v32, %v128
  %v130 = vpop.f32.mrb[0].mxu0
  %131 = vmatprep.mubr.f32.mxu0 0.0
  %132 = vmatmul.mubr.f32.gmra.mrb[0].mxu0 %v54
  %v133 = vpop.f32.mrb[0].mxu0
  %v134 = vadd.f32 %v37, %v133
  %v135 = vpop.f32.mrb[0].mxu0
  %136 = vmatprep.mubr.f32.mxu0 0.0
  %137 = vmatmul.mubr.f32.gmra.mrb[0].mxu0 %v57
  %v138 = vpop.f32.mrb[0].mxu0
  %v139 = vadd.f32 %v42, %v138
  %v140 = vpop.f32.mrb[0].mxu0
  %141 = vmatprep.mubr.f32.mxu0 0.0
  %142 = vmatmul.mubr.f32.gmra.mrb[0].mxu0 %v60
  %v143 = vpop.f32.mrb[0].mxu0
  %v144 = vadd.f32 %v47, %v143
  %v145 = vpop.f32.mrb[0].mxu0
  %146 = vdwg.mxu0
  %v147 = vtanh.pop %v129
  %v148 = vtanh.pop %v134
  %v149 = vtanh.pop %v139
  %v150 = vtanh.pop %v144
  %v151 = vld [vmem:[%s3] sm:$0xff]
  %v152 = vld [vmem:[%s3 + $0x8] sm:$0xff]
  %v153 = vld [vmem:[%s3 + $0x10] sm:$0xff]
  %v154 = vld [vmem:[%s3 + $0x18] sm:$0xff]
  %v156 = vsel %vm49, %v151, 0
  %v159 = vsel %vm49, %v152, 0
  %v162 = vsel %vm49, %v153, 0
  %v165 = vsel %vm49, %v154, 0
  %167 = vmatprep.subr.mxu0 0.0
  %168 = vmatpush1.msra.mxu0 %v147
  %169 = vmatprep.subr.mxu0 0.0
  %170 = vmatpush1.msra.mxu0 %v148
  %171 = vmatprep.subr.mxu0 0.0
  %172 = vmatpush1.msra.mxu0 %v149
  %173 = vmatprep.subr.mxu0 0.0
  %174 = vmatpush1.msra.mxu0 %v150
  %175 = vmatprep.subr.mxu0 0.0
  %176 = vmatpush1.msra.mxu0 0.0
  %177 = vmatprep.subr.mxu0 0.0
  %178 = vmatpush1.msra.mxu0 0.0
  %179 = vmatprep.subr.mxu0 0.0
  %180 = vmatpush1.msra.mxu0 0.0
  %181 = vmatprep.subr.mxu0 0.0
  %182 = vmatpush1.msra.mxu0 0.0
  %183 = vmatprep.subr.mxu0 0.0
  %184 = vmatpush1.msra.mxu0 0.0
  %185 = vmatprep.subr.mxu0 0.0
  %186 = vmatpush1.msra.mxu0 0.0
  %187 = vmatprep.subr.mxu0 0.0
  %188 = vmatpush1.msra.mxu0 0.0
  %189 = vmatprep.subr.mxu0 0.0
  %190 = vmatpush1.msra.mxu0 0.0
  %191 = vmatprep.subr.mxu0 0.0
  %192 = vmatpush1.msra.mxu0 0.0
  %193 = vmatprep.subr.mxu0 0.0
  %194 = vmatpush1.msra.mxu0 0.0
  %195 = vmatprep.subr.mxu0 0.0
  %196 = vmatpush1.msra.mxu0 0.0
  %197 = vmatprep.subr.mxu0 0.0
  %198 = vmatpush1.msra.mxu0 0.0
  %199 = vmatprep.subr.mxu0 0.0
  %200 = vmatpush1.msra.mxu0 0.0
  %201 = vmatprep.subr.mxu0 0.0
  %202 = vmatpush1.msra.mxu0 0.0
  %203 = vmatprep.subr.mxu0 0.0
  %204 = vmatpush1.msra.mxu0 0.0
  %205 = vmatprep.subr.mxu0 0.0
  %206 = vmatpush1.msra.mxu0 0.0
  %207 = vmatprep.subr.mxu0 0.0
  %208 = vmatpush1.msra.mxu0 0.0
  %209 = vmatprep.subr.mxu0 0.0
  %210 = vmatpush1.msra.mxu0 0.0
  %211 = vmatprep.subr.mxu0 0.0
  %212 = vmatpush1.msra.mxu0 0.0
  %213 = vmatprep.subr.mxu0 0.0
  %214 = vmatpush1.msra.mxu0 0.0
  %215 = vmatprep.subr.mxu0 0.0
  %216 = vmatpush1.msra.mxu0 0.0
  %217 = vmatprep.subr.mxu0 0.0
  %218 = vmatpush1.msra.mxu0 0.0
  %219 = vmatprep.subr.mxu0 0.0
  %220 = vmatpush1.msra.mxu0 0.0
  %221 = vmatprep.subr.mxu0 0.0
  %222 = vmatpush1.msra.mxu0 0.0
  %223 = vmatprep.subr.mxu0 0.0
  %224 = vmatpush1.msra.mxu0 0.0
  %225 = vmatprep.subr.mxu0 0.0
  %226 = vmatpush1.msra.mxu0 0.0
  %227 = vmatprep.subr.mxu0 0.0
  %228 = vmatpush1.msra.mxu0 0.0
  %229 = vmatprep.subr.mxu0 0.0
  %230 = vmatpush1.msra.mxu0 0.0
  %231 = vmatprep.mubr.f32.mxu0 0.0
  %232 = vmatmul.mubr.f32.gmra.mrb[0].mxu0 %v156
  %v233 = vpop.f32.mrb[0].mxu0
  %v234 = vadd.f32 0.0, %v233
  %v235 = vpop.f32.mrb[0].mxu0
  %236 = vmatprep.mubr.f32.mxu0 0.0
  %237 = vmatmul.mubr.f32.gmra.mrb[0].mxu0 %v159
  %v238 = vpop.f32.mrb[0].mxu0
  %v239 = vadd.f32 0.0, %v238
  %v240 = vpop.f32.mrb[0].mxu0
  %241 = vmatprep.mubr.f32.mxu0 0.0
  %242 = vmatmul.mubr.f32.gmra.mrb[0].mxu0 %v162
  %v243 = vpop.f32.mrb[0].mxu0
  %v244 = vadd.f32 0.0, %v243
  %v245 = vpop.f32.mrb[0].mxu0
  %246 = vmatprep.mubr.f32.mxu0 0.0
  %247 = vmatmul.mubr.f32.gmra.mrb[0].mxu0 %v165
  %v248 = vpop.f32.mrb[0].mxu0
  %v249 = vadd.f32 0.0, %v248
  %v250 = vpop.f32.mrb[0].mxu0
  %251 = vdwg.mxu0
  %vm252 = vcmask 15360
  %v253 = vsel %vm252, %v234, 0.0
  %254 = vadd.xlane.f32.xlu0 %v253
  %v255 = vpop.xlane.xlu0 %254
  %v256 = vsel %vm252, %v239, 0.0
  %257 = vadd.xlane.f32.xlu0 %v256
  %v258 = vpop.xlane.xlu0 %257
  %v259 = vsel %vm252, %v244, 0.0
  %260 = vadd.xlane.f32.xlu0 %v259
  %v261 = vpop.xlane.xlu0 %260
  %v262 = vsel %vm252, %v249, 0.0
  %263 = vadd.xlane.f32.xlu0 %v262
  %v264 = vpop.xlane.xlu0 %263
  %v265 = vrcp.pop 2.0
  %v266 = vmul.f32 %v255, %v265
  %v267 = vmul.f32 %v258, %v265
  %v268 = vmul.f32 %v261, %v265
  %v269 = vmul.f32 %v264, %v265
  %v270 = vsub.f32 %v147, %v266
  %v271 = vsub.f32 %v148, %v267
  %v272 = vsub.f32 %v149, %v268
  %v273 = vsub.f32 %v150, %v269
  %v274 = vmul.f32 %v270, %v270
  %v275 = vmul.f32 %v271, %v271
  %v276 = vmul.f32 %v272, %v272
  %v277 = vmul.f32 %v273, %v273
  %278 = vmatprep.subr.mxu0 0.0
  %279 = vmatpush1.msra.mxu0 %v274
  %280 = vmatprep.subr.mxu0 0.0
  %281 = vmatpush1.msra.mxu0 %v275
  %282 = vmatprep.subr.mxu0 0.0
  %283 = vmatpush1.msra.mxu0 %v276
  %284 = vmatprep.subr.mxu0 0.0
  %285 = vmatpush1.msra.mxu0 %v277
  %286 = vmatprep.subr.mxu0 0.0
  %287 = vmatpush1.msra.mxu0 0.0
  %288 = vmatprep.subr.mxu0 0.0
  %289 = vmatpush1.msra.mxu0 0.0
  %290 = vmatprep.subr.mxu0 0.0
  %291 = vmatpush1.msra.mxu0 0.0
  %292 = vmatprep.subr.mxu0 0.0
  %293 = vmatpush1.msra.mxu0 0.0
  %294 = vmatprep.subr.mxu0 0.0
  %295 = vmatpush1.msra.mxu0 0.0
  %296 = vmatprep.subr.mxu0 0.0
  %297 = vmatpush1.msra.mxu0 0.0
  %298 = vmatprep.subr.mxu0 0.0
  %299 = vmatpush1.msra.mxu0 0.0
  %300 = vmatprep.subr.mxu0 0.0
  %301 = vmatpush1.msra.mxu0 0.0
  %302 = vmatprep.subr.mxu0 0.0
  %303 = vmatpush1.msra.mxu0 0.0
  %304 = vmatprep.subr.mxu0 0.0
  %305 = vmatpush1.msra.mxu0 0.0
  %306 = vmatprep.subr.mxu0 0.0
  %307 = vmatpush1.msra.mxu0 0.0
  %308 = vmatprep.subr.mxu0 0.0
  %309 = vmatpush1.msra.mxu0 0.0
  %310 = vmatprep.subr.mxu0 0.0
  %311 = vmatpush1.msra.mxu0 0.0
  %312 = vmatprep.subr.mxu0 0.0
  %313 = vmatpush1.msra.mxu0 0.0
  %314 = vmatprep.subr.mxu0 0.0
  %315 = vmatpush1.msra.mxu0 0.0
  %316 = vmatprep.subr.mxu0 0.0
  %317 = vmatpush1.msra.mxu0 0.0
  %318 = vmatprep.subr.mxu0 0.0
  %319 = vmatpush1.msra.mxu0 0.0
  %320 = vmatprep.subr.mxu0 0.0
  %321 = vmatpush1.msra.mxu0 0.0
  %322 = vmatprep.subr.mxu0 0.0
  %323 = vmatpush1.msra.mxu0 0.0
  %324 = vmatprep.subr.mxu0 0.0
  %325 = vmatpush1.msra.mxu0 0.0
  %326 = vmatprep.subr.mxu0 0.0
  %327 = vmatpush1.msra.mxu0 0.0
  %328 = vmatprep.subr.mxu0 0.0
  %329 = vmatpush1.msra.mxu0 0.0
  %330 = vmatprep.subr.mxu0 0.0
  %331 = vmatpush1.msra.mxu0 0.0
  %332 = vmatprep.subr.mxu0 0.0
  %333 = vmatpush1.msra.mxu0 0.0
  %334 = vmatprep.subr.mxu0 0.0
  %335 = vmatpush1.msra.mxu0 0.0
  %336 = vmatprep.subr.mxu0 0.0
  %337 = vmatpush1.msra.mxu0 0.0
  %338 = vmatprep.subr.mxu0 0.0
  %339 = vmatpush1.msra.mxu0 0.0
  %340 = vmatprep.subr.mxu0 0.0
  %341 = vmatpush1.msra.mxu0 0.0
  %342 = vmatprep.mubr.f32.mxu0 0.0
  %343 = vmatmul.mubr.f32.gmra.mrb[0].mxu0 %v156
  %v344 = vpop.f32.mrb[0].mxu0
  %v345 = vadd.f32 0.0, %v344
  %v346 = vpop.f32.mrb[0].mxu0
  %347 = vmatprep.mubr.f32.mxu0 0.0
  %348 = vmatmul.mubr.f32.gmra.mrb[0].mxu0 %v159
  %v349 = vpop.f32.mrb[0].mxu0
  %v350 = vadd.f32 0.0, %v349
  %v351 = vpop.f32.mrb[0].mxu0
  %352 = vmatprep.mubr.f32.mxu0 0.0
  %353 = vmatmul.mubr.f32.gmra.mrb[0].mxu0 %v162
  %v354 = vpop.f32.mrb[0].mxu0
  %v355 = vadd.f32 0.0, %v354
  %v356 = vpop.f32.mrb[0].mxu0
  %357 = vmatprep.mubr.f32.mxu0 0.0
  %358 = vmatmul.mubr.f32.gmra.mrb[0].mxu0 %v165
  %v359 = vpop.f32.mrb[0].mxu0
  %v360 = vadd.f32 0.0, %v359
  %v361 = vpop.f32.mrb[0].mxu0
  %362 = vdwg.mxu0
  %v363 = vsel %vm252, %v345, 0.0
  %364 = vadd.xlane.f32.xlu0 %v363
  %v365 = vpop.xlane.xlu0 %364
  %v366 = vsel %vm252, %v350, 0.0
  %367 = vadd.xlane.f32.xlu0 %v366
  %v368 = vpop.xlane.xlu0 %367
  %v369 = vsel %vm252, %v355, 0.0
  %370 = vadd.xlane.f32.xlu0 %v369
  %v371 = vpop.xlane.xlu0 %370
  %v372 = vsel %vm252, %v360, 0.0
  %373 = vadd.xlane.f32.xlu0 %v372
  %v374 = vpop.xlane.xlu0 %373
  %v375 = vmul.f32 %v365, %v265
  %v376 = vmul.f32 %v368, %v265
  %v377 = vmul.f32 %v371, %v265
  %v378 = vmul.f32 %v374, %v265
  %v379 = vadd.f32 %v375, 1e-05
  %v380 = vadd.f32 %v376, 1e-05
  %v381 = vadd.f32 %v377, 1e-05
  %v382 = vadd.f32 %v378, 1e-05
  %v383 = vrsqrt.pop %v379
  %v384 = vrsqrt.pop %v380
  %v385 = vrsqrt.pop %v381
  %v386 = vrsqrt.pop %v382
  %v387 = vmul.f32 %v270, %v383
  %v388 = vmul.f32 %v271, %v384
  %v389 = vmul.f32 %v272, %v385
  %v390 = vmul.f32 %v273, %v386
  %391 = vst.msk [vmem:[%s4] sm:$0xff] %vm252, %v387
  %392 = vst.msk [vmem:[%s4 + $0x8] sm:$0xff] %vm252, %v388
  %393 = vst.msk [vmem:[%s4 + $0x10] sm:$0xff] %vm252, %v389
  %394 = vst.msk [vmem:[%s4 + $0x18] sm:$0xff] %vm252, %v390
  // Predicated region
  $region18: #{mtq_mnist_forward.10} parent=0 // pred_check
    _
  $region19: #{mtq_mnist_forward.10} parent=0 // pred_check_branch
    %396 = sbr.rel (0) target = $region21
  $region20: #{mtq_mnist_forward.10} parent=0 // pred_region
    _
  $region21: #{mtq_mnist_forward.10} parent=0 // pred_fallthru
    _
  // Predicated region
  $region22: #{mtq_mnist_forward.10} parent=0 // pred_check
    _
  $region23: #{mtq_mnist_forward.10} parent=0 // pred_check_branch
    %398 = sbr.rel (0) target = $region25
  $region24: #{mtq_mnist_forward.10} parent=0 // pred_region
    _
  $region25: #{mtq_mnist_forward.10} parent=0 // pred_fallthru
    _

// kernel: mtq_mnist_forward.11
$region0: #{mtq_mnist_forward.11}
  #allocation0 [shape = 'u32[]', space=smem, size = 0x4, offset = 0x4, fixed_abs, tag = 'smem constant byte address 0x4 - core index']
  #allocation1 [shape = 'u32[144,128]{1,0:T(1,128)}', space=vmem, size = 0x12000, scoped, tag = 'internal scratch']
  %s0 = inlined_call_operand.vmem [shape: f32[8,72], index: 0, kind: input, shape index: {}]
  %s1 = inlined_call_operand.vmem [shape: f32[72,50], index: 1, kind: input, shape index: {}]
  %s2 = inlined_call_operand.vmem [shape: f32[8,1], index: 2, kind: input, shape index: {}]
  %s3 = inlined_call_operand.vmem [shape: f32[8,50], index: 3, kind: output, shape index: {}]
  %s4 = sld [smem:[#allocation0]]
  $region22: #{mtq_mnist_forward.11} parent=0
    _
  %s6 = ssub.s32 1, %s4
  %s7 = scalar_select 0, %s6, %s4
  // Predicated region
  $region2: #{mtq_mnist_forward.11} parent=0 // pred_check
    _
  $region3: #{mtq_mnist_forward.11} parent=0 // pred_check_branch
    %9 = sbr.rel (0) target = $region5
  $region4: #{mtq_mnist_forward.11} parent=0 // pred_region
    _
  $region5: #{mtq_mnist_forward.11} parent=0 // pred_fallthru
    _
  // Predicated region
  $region6: #{mtq_mnist_forward.11} parent=0 // pred_check
    _
  $region7: #{mtq_mnist_forward.11} parent=0 // pred_check_branch
    %11 = sbr.rel (0) target = $region9
  $region8: #{mtq_mnist_forward.11} parent=0 // pred_region
    _
  $region9: #{mtq_mnist_forward.11} parent=0 // pred_fallthru
    _
  // Predicated region
  $region10: #{mtq_mnist_forward.11} parent=0 // pred_check
    _
  $region11: #{mtq_mnist_forward.11} parent=0 // pred_check_branch
    %13 = sbr.rel (0) target = $region13
  $region12: #{mtq_mnist_forward.11} parent=0 // pred_region
    _
  $region13: #{mtq_mnist_forward.11} parent=0 // pred_fallthru
    _
  %v14 = vld [vmem:[%s0] sm:$0xff]
  %v15 = vld [vmem:[%s1] sm:$0xff]
  %v16 = vld [vmem:[%s1 + $0x8] sm:$0xff]
  %v17 = vld [vmem:[%s1 + $0x10] sm:$0xff]
  %v18 = vld [vmem:[%s1 + $0x18] sm:$0xff]
  %v19 = vld [vmem:[%s1 + $0x20] sm:$0xff]
  %v20 = vld [vmem:[%s1 + $0x28] sm:$0xff]
  %v21 = vld [vmem:[%s1 + $0x30] sm:$0xff]
  %v22 = vld [vmem:[%s1 + $0x38] sm:$0xff]
  %v23 = vld [vmem:[%s1 + $0x40] sm:$0xff]
  %v24 = vld [vmem:[%s2] sm:$0xff]
  %26 = vset.pattern.permute.xlu0 0
  %27 = vperm.xlu0 %26, %v24
  %v28 = vpop.permute.xlu0 %27
  %vm30 = vcmask 588800
  %v32 = vsel %vm30, %v14, 0
  %34 = vmatprep.subr.mxu0 0.0
  %35 = vmatpush1.msra.mxu0 %v15
  %36 = vmatprep.subr.mxu0 0.0
  %37 = vmatpush1.msra.mxu0 %v16
  %38 = vmatprep.subr.mxu0 0.0
  %39 = vmatpush1.msra.mxu0 %v17
  %40 = vmatprep.subr.mxu0 0.0
  %41 = vmatpush1.msra.mxu0 %v18
  %42 = vmatprep.subr.mxu0 0.0
  %43 = vmatpush1.msra.mxu0 %v19
  %44 = vmatprep.subr.mxu0 0.0
  %45 = vmatpush1.msra.mxu0 %v20
  %46 = vmatprep.subr.mxu0 0.0
  %47 = vmatpush1.msra.mxu0 %v21
  %48 = vmatprep.subr.mxu0 0.0
  %49 = vmatpush1.msra.mxu0 %v22
  %50 = vmatprep.subr.mxu0 0.0
  %51 = vmatpush1.msra.mxu0 %v23
  %52 = vmatprep.subr.mxu0 0.0
  %53 = vmatpush1.msra.mxu0 0.0
  %54 = vmatprep.subr.mxu0 0.0
  %55 = vmatpush1.msra.mxu0 0.0
  %56 = vmatprep.subr.mxu0 0.0
  %57 = vmatpush1.msra.mxu0 0.0
  %58 = vmatprep.subr.mxu0 0.0
  %59 = vmatpush1.msra.mxu0 0.0
  %60 = vmatprep.subr.mxu0 0.0
  %61 = vmatpush1.msra.mxu0 0.0
  %62 = vmatprep.subr.mxu0 0.0
  %63 = vmatpush1.msra.mxu0 0.0
  %64 = vmatprep.subr.mxu0 0.0
  %65 = vmatpush1.msra.mxu0 0.0
  %66 = vmatprep.subr.mxu0 0.0
  %67 = vmatpush1.msra.mxu0 0.0
  %68 = vmatprep.subr.mxu0 0.0
  %69 = vmatpush1.msra.mxu0 0.0
  %70 = vmatprep.subr.mxu0 0.0
  %71 = vmatpush1.msra.mxu0 0.0
  %72 = vmatprep.subr.mxu0 0.0
  %73 = vmatpush1.msra.mxu0 0.0
  %74 = vmatprep.subr.mxu0 0.0
  %75 = vmatpush1.msra.mxu0 0.0
  %76 = vmatprep.subr.mxu0 0.0
  %77 = vmatpush1.msra.mxu0 0.0
  %78 = vmatprep.subr.mxu0 0.0
  %79 = vmatpush1.msra.mxu0 0.0
  %80 = vmatprep.subr.mxu0 0.0
  %81 = vmatpush1.msra.mxu0 0.0
  %82 = vmatprep.subr.mxu0 0.0
  %83 = vmatpush1.msra.mxu0 0.0
  %84 = vmatprep.subr.mxu0 0.0
  %85 = vmatpush1.msra.mxu0 0.0
  %86 = vmatprep.subr.mxu0 0.0
  %87 = vmatpush1.msra.mxu0 0.0
  %88 = vmatprep.subr.mxu0 0.0
  %89 = vmatpush1.msra.mxu0 0.0
  %90 = vmatprep.subr.mxu0 0.0
  %91 = vmatpush1.msra.mxu0 0.0
  %92 = vmatprep.subr.mxu0 0.0
  %93 = vmatpush1.msra.mxu0 0.0
  %94 = vmatprep.subr.mxu0 0.0
  %95 = vmatpush1.msra.mxu0 0.0
  %96 = vmatprep.subr.mxu0 0.0
  %97 = vmatpush1.msra.mxu0 0.0
  %98 = vmatprep.mubr.f32.mxu0 0.0
  %99 = vmatmul.mubr.f32.gmra.mrb[0].mxu0 %v32
  %v100 = vpop.f32.mrb[0].mxu0
  %v101 = vadd.f32 %v28, %v100
  %v102 = vpop.f32.mrb[0].mxu0
  %103 = vdwg.mxu0
  %v104 = vtanh.pop %v101
  %vm105 = vcmask 408576
  %v106 = vsel %vm105, %v104, 0.0
  %107 = vadd.xlane.f32.xlu0 %v106
  %v108 = vpop.xlane.xlu0 %107
  %v109 = vrcp.pop 50.0
  %v110 = vmul.f32 %v108, %v109
  %v111 = vsub.f32 %v104, %v110
  %v112 = vmul.f32 %v111, %v111
  %v113 = vsel %vm105, %v112, 0.0
  %114 = vadd.xlane.f32.xlu0 %v113
  %v115 = vpop.xlane.xlu0 %114
  %v116 = vmul.f32 %v115, %v109
  %v117 = vadd.f32 %v116, 1e-05
  %v118 = vrsqrt.pop %v117
  %v119 = vmul.f32 %v111, %v118
  %120 = vst.msk [vmem:[%s3] sm:$0xff] %vm105, %v119
  // Predicated region
  $region14: #{mtq_mnist_forward.11} parent=0 // pred_check
    _
  $region15: #{mtq_mnist_forward.11} parent=0 // pred_check_branch
    %122 = sbr.rel (0) target = $region17
  $region16: #{mtq_mnist_forward.11} parent=0 // pred_region
    _
  $region17: #{mtq_mnist_forward.11} parent=0 // pred_fallthru
    _
  // Predicated region
  $region18: #{mtq_mnist_forward.11} parent=0 // pred_check
    _
  $region19: #{mtq_mnist_forward.11} parent=0 // pred_check_branch
    %124 = sbr.rel (0) target = $region21
  $region20: #{mtq_mnist_forward.11} parent=0 // pred_region
    _
  $region21: #{mtq_mnist_forward.11} parent=0 // pred_fallthru
    _

// kernel: mtq_mnist_forward.12
$region0: #{mtq_mnist_forward.12}
  #allocation0 [shape = 'u32[]', space=smem, size = 0x4, offset = 0x4, fixed_abs, tag = 'smem constant byte address 0x4 - core index']
  #allocation1 [shape = 'u32[144,128]{1,0:T(1,128)}', space=vmem, size = 0x12000, scoped, tag = 'internal scratch']
  %s0 = inlined_call_operand.vmem [shape: f32[4,200], index: 0, kind: input, shape index: {}]
  %s1 = inlined_call_operand.vmem [shape: f32[200,200], index: 1, kind: input, shape index: {}]
  %s2 = inlined_call_operand.vmem [shape: f32[4,1], index: 2, kind: input, shape index: {}]
  %s3 = inlined_call_operand.vmem [shape: f32[4,200], index: 3, kind: output, shape index: {}]
  %s4 = sld [smem:[#allocation0]]
  $region22: #{mtq_mnist_forward.12} parent=0
    _
  %s6 = ssub.s32 1, %s4
  %s7 = scalar_select 0, %s6, %s4
  // Predicated region
  $region2: #{mtq_mnist_forward.12} parent=0 // pred_check
    _
  $region3: #{mtq_mnist_forward.12} parent=0 // pred_check_branch
    %9 = sbr.rel (0) target = $region5
  $region4: #{mtq_mnist_forward.12} parent=0 // pred_region
    _
  $region5: #{mtq_mnist_forward.12} parent=0 // pred_fallthru
    _
  // Predicated region
  $region6: #{mtq_mnist_forward.12} parent=0 // pred_check
    _
  $region7: #{mtq_mnist_forward.12} parent=0 // pred_check_branch
    %11 = sbr.rel (0) target = $region9
  $region8: #{mtq_mnist_forward.12} parent=0 // pred_region
    _
  $region9: #{mtq_mnist_forward.12} parent=0 // pred_fallthru
    _
  // Predicated region
  $region10: #{mtq_mnist_forward.12} parent=0 // pred_check
    _
  $region11: #{mtq_mnist_forward.12} parent=0 // pred_check_branch
    %13 = sbr.rel (0) target = $region13
  $region12: #{mtq_mnist_forward.12} parent=0 // pred_region
    _
  $region13: #{mtq_mnist_forward.12} parent=0 // pred_fallthru
    _
  %v14 = vld [vmem:[%s0] sm:$0xff]
  %v15 = vld [vmem:[%s1] sm:$0xff]
  %v16 = vld [vmem:[%s1 + $0x8] sm:$0xff]
  %v17 = vld [vmem:[%s1 + $0x10] sm:$0xff]
  %v18 = vld [vmem:[%s1 + $0x18] sm:$0xff]
  %v19 = vld [vmem:[%s1 + $0x20] sm:$0xff]
  %v20 = vld [vmem:[%s1 + $0x28] sm:$0xff]
  %v21 = vld [vmem:[%s1 + $0x30] sm:$0xff]
  %v22 = vld [vmem:[%s1 + $0x38] sm:$0xff]
  %v23 = vld [vmem:[%s1 + $0x40] sm:$0xff]
  %v24 = vld [vmem:[%s1 + $0x48] sm:$0xff]
  %v25 = vld [vmem:[%s1 + $0x50] sm:$0xff]
  %v26 = vld [vmem:[%s1 + $0x58] sm:$0xff]
  %v27 = vld [vmem:[%s1 + $0x60] sm:$0xff]
  %v28 = vld [vmem:[%s1 + $0x68] sm:$0xff]
  %v29 = vld [vmem:[%s1 + $0x70] sm:$0xff]
  %v30 = vld [vmem:[%s1 + $0x78] sm:$0xff]
  %v31 = vld [vmem:[%s1 + $0x80] sm:$0xff]
  %v32 = vld [vmem:[%s1 + $0x88] sm:$0xff]
  %v33 = vld [vmem:[%s1 + $0x90] sm:$0xff]
  %v34 = vld [vmem:[%s1 + $0x98] sm:$0xff]
  %v35 = vld [vmem:[%s1 + $0xa0] sm:$0xff]
  %v36 = vld [vmem:[%s1 + $0xa8] sm:$0xff]
  %v37 = vld [vmem:[%s1 + $0xb0] sm:$0xff]
  %v38 = vld [vmem:[%s1 + $0xb8] sm:$0xff]
  %v39 = vld [vmem:[%s1 + $0xc0] sm:$0xff]
  %v40 = vld [vmem:[%s1 + $0xc8] sm:$0xff]
  %v41 = vld [vmem:[%s1 + $0xd0] sm:$0xff]
  %v42 = vld [vmem:[%s1 + $0xd8] sm:$0xff]
  %v43 = vld [vmem:[%s1 + $0xe0] sm:$0xff]
  %v44 = vld [vmem:[%s1 + $0xe8] sm:$0xff]
  %v45 = vld [vmem:[%s1 + $0xf0] sm:$0xff]
  %v46 = vld [vmem:[%s1 + $0xf8] sm:$0xff]
  %v47 = vld [vmem:[%s1 + $0x100] sm:$0xff]
  %v48 = vld [vmem:[%s1 + $0x108] sm:$0xff]
  %v49 = vld [vmem:[%s1 + $0x110] sm:$0xff]
  %v50 = vld [vmem:[%s1 + $0x118] sm:$0xff]
  %v51 = vld [vmem:[%s1 + $0x120] sm:$0xff]
  %v52 = vld [vmem:[%s1 + $0x128] sm:$0xff]
  %v53 = vld [vmem:[%s1 + $0x130] sm:$0xff]
  %v54 = vld [vmem:[%s1 + $0x138] sm:$0xff]
  %v55 = vld [vmem:[%s1 + $0x140] sm:$0xff]
  %v56 = vld [vmem:[%s1 + $0x148] sm:$0xff]
  %v57 = vld [vmem:[%s1 + $0x150] sm:$0xff]
  %v58 = vld [vmem:[%s1 + $0x158] sm:$0xff]
  %v59 = vld [vmem:[%s1 + $0x160] sm:$0xff]
  %v60 = vld [vmem:[%s1 + $0x168] sm:$0xff]
  %v61 = vld [vmem:[%s1 + $0x170] sm:$0xff]
  %v62 = vld [vmem:[%s1 + $0x178] sm:$0xff]
  %v63 = vld [vmem:[%s1 + $0x180] sm:$0xff]
  %v64 = vld [vmem:[%s1 + $0x188] sm:$0xff]
  %v65 = vld [vmem:[%s2] sm:$0xf]
  %67 = vset.pattern.permute.xlu0 0
  %68 = vperm.xlu0 %67, %v65
  %v69 = vpop.permute.xlu0 %68
  %v72 = vcombine.high %v14, %v14
  %vm73 = vcmask 588800
  %v74 = vsel %vm73, %v72, 0
  %76 = vmatprep.subr.mxu0 %v16
  %77 = vmatpush1.msra.mxu0 %v15
  %78 = vmatprep.subr.mxu0 %v18
  %79 = vmatpush1.msra.mxu0 %v17
  %80 = vmatprep.subr.mxu0 %v20
  %81 = vmatpush1.msra.mxu0 %v19
  %82 = vmatprep.subr.mxu0 %v22
  %83 = vmatpush1.msra.mxu0 %v21
  %84 = vmatprep.subr.mxu0 %v24
  %85 = vmatpush1.msra.mxu0 %v23
  %86 = vmatprep.subr.mxu0 %v26
  %87 = vmatpush1.msra.mxu0 %v25
  %88 = vmatprep.subr.mxu0 %v28
  %89 = vmatpush1.msra.mxu0 %v27
  %90 = vmatprep.subr.mxu0 %v30
  %91 = vmatpush1.msra.mxu0 %v29
  %92 = vmatprep.subr.mxu0 %v32
  %93 = vmatpush1.msra.mxu0 %v31
  %94 = vmatprep.subr.mxu0 %v34
  %95 = vmatpush1.msra.mxu0 %v33
  %96 = vmatprep.subr.mxu0 %v36
  %97 = vmatpush1.msra.mxu0 %v35
  %98 = vmatprep.subr.mxu0 %v38
  %99 = vmatpush1.msra.mxu0 %v37
  %100 = vmatprep.subr.mxu0 %v40
  %101 = vmatpush1.msra.mxu0 %v39
  %102 = vmatprep.subr.mxu0 %v42
  %103 = vmatpush1.msra.mxu0 %v41
  %104 = vmatprep.subr.mxu0 %v44
  %105 = vmatpush1.msra.mxu0 %v43
  %106 = vmatprep.subr.mxu0 %v46
  %107 = vmatpush1.msra.mxu0 %v45
  %108 = vmatprep.subr.mxu0 %v48
  %109 = vmatpush1.msra.mxu0 %v47
  %110 = vmatprep.subr.mxu0 %v50
  %111 = vmatpush1.msra.mxu0 %v49
  %112 = vmatprep.subr.mxu0 %v52
  %113 = vmatpush1.msra.mxu0 %v51
  %114 = vmatprep.subr.mxu0 %v54
  %115 = vmatpush1.msra.mxu0 %v53
  %116 = vmatprep.subr.mxu0 %v56
  %117 = vmatpush1.msra.mxu0 %v55
  %118 = vmatprep.subr.mxu0 %v58
  %119 = vmatpush1.msra.mxu0 %v57
  %120 = vmatprep.subr.mxu0 %v60
  %121 = vmatpush1.msra.mxu0 %v59
  %122 = vmatprep.subr.mxu0 %v62
  %123 = vmatpush1.msra.mxu0 %v61
  %124 = vmatprep.subr.mxu0 %v64
  %125 = vmatpush1.msra.mxu0 %v63
  %126 = vmatprep.subr.mxu0 0.0
  %127 = vmatpush1.msra.mxu0 0.0
  %128 = vmatprep.subr.mxu0 0.0
  %129 = vmatpush1.msra.mxu0 0.0
  %130 = vmatprep.subr.mxu0 0.0
  %131 = vmatpush1.msra.mxu0 0.0
  %132 = vmatprep.subr.mxu0 0.0
  %133 = vmatpush1.msra.mxu0 0.0
  %134 = vmatprep.subr.mxu0 0.0
  %135 = vmatpush1.msra.mxu0 0.0
  %136 = vmatprep.subr.mxu0 0.0
  %137 = vmatpush1.msra.mxu0 0.0
  %138 = vmatprep.subr.mxu0 0.0
  %139 = vmatpush1.msra.mxu0 0.0
  %140 = vmatprep.mubr.f32.mxu0 %v74
  %141 = vmatmul.mubr.f32.gmra.mrb[0].mxu0 %v14
  %v142 = vpop.f32.mrb[0].mxu0
  %v143 = vadd.f32 %v69, %v142
  %v144 = vpop.f32.mrb[0].mxu0
  %v145 = vadd.f32 %v69, %v144
  %146 = vdwg.mxu0
  %v147 = vtanh.pop %v143
  %v148 = vtanh.pop %v145
  %vm149 = vcmask 1043456
  %v150 = vsel %vm149, %v147, 0.0
  %vm151 = vcmask 584704
  %v152 = vsel %vm151, %v148, 0.0
  %v153 = vadd.f32 %v150, %v152
  %154 = vadd.xlane.f32.xlu0 %v153
  %v155 = vpop.xlane.xlu0 %154
  %v156 = vrcp.pop 200.0
  %v157 = vmul.f32 %v155, %v156
  %v158 = vsub.f32 %v147, %v157
  %v159 = vsub.f32 %v148, %v157
  %v160 = vmul.f32 %v158, %v158
  %v161 = vmul.f32 %v159, %v159
  %v162 = vsel %vm149, %v160, 0.0
  %v163 = vsel %vm151, %v161, 0.0
  %v164 = vadd.f32 %v162, %v163
  %165 = vadd.xlane.f32.xlu0 %v164
  %v166 = vpop.xlane.xlu0 %165
  %v167 = vmul.f32 %v166, %v156
  %v168 = vadd.f32 %v167, 1e-05
  %v169 = vrsqrt.pop %v168
  %v170 = vmul.f32 %v158, %v169
  %v171 = vmul.f32 %v159, %v169
  %v174 = vcombine.low %v170, %v171
  %vm176 = vcmask 588804
  %vm177 = vmor %vm176, %vm149
  %178 = vst.msk [vmem:[%s3] sm:$0xff] %vm177, %v174
  // Predicated region
  $region14: #{mtq_mnist_forward.12} parent=0 // pred_check
    _
  $region15: #{mtq_mnist_forward.12} parent=0 // pred_check_branch
    %180 = sbr.rel (0) target = $region17
  $region16: #{mtq_mnist_forward.12} parent=0 // pred_region
    _
  $region17: #{mtq_mnist_forward.12} parent=0 // pred_fallthru
    _
  // Predicated region
  $region18: #{mtq_mnist_forward.12} parent=0 // pred_check
    _
  $region19: #{mtq_mnist_forward.12} parent=0 // pred_check_branch
    %182 = sbr.rel (0) target = $region21
  $region20: #{mtq_mnist_forward.12} parent=0 // pred_region
    _
  $region21: #{mtq_mnist_forward.12} parent=0 // pred_fallthru
    _

// kernel: mtq_mnist_forward.13
$region0: #{mtq_mnist_forward.13}
  #allocation0 [shape = 'u32[]', space=smem, size = 0x4, offset = 0x4, fixed_abs, tag = 'smem constant byte address 0x4 - core index']
  #allocation1 [shape = 'u32[144,128]{1,0:T(1,128)}', space=vmem, size = 0x12000, scoped, tag = 'internal scratch']
  #allocation2 [shape = 'f32[1,1]{1,0:T(1,128)S(1)}', space=vmem, size = 0x200, scoped, tag = 'scoped memory for mtq_mnist_forward.13']
  %s0 = inlined_call_operand.vmem [shape: f32[1,100], index: 0, kind: input, shape index: {}]
  %s1 = inlined_call_operand.vmem [shape: f32[100,800], index: 1, kind: input, shape index: {}]
  %s2 = inlined_call_operand.<no memory space> [shape: f32[1,1], index: 2, kind: input, shape index: {}]
  %s3 = inlined_call_operand.vmem [shape: f32[1,800], index: 3, kind: output, shape index: {}]
  %s4 = sld [smem:[#allocation0]]
  $region22: #{mtq_mnist_forward.13} parent=0
    _
  %s6 = ssub.s32 1, %s4
  %s7 = scalar_select 0, %s6, %s4
  %v8 = vstv %s2
  %9 = vst [vmem:[#allocation2] sm:$0x1] %v8
  // Predicated region
  $region2: #{mtq_mnist_forward.13} parent=0 // pred_check
    _
  $region3: #{mtq_mnist_forward.13} parent=0 // pred_check_branch
    %11 = sbr.rel (0) target = $region5
  $region4: #{mtq_mnist_forward.13} parent=0 // pred_region
    _
  $region5: #{mtq_mnist_forward.13} parent=0 // pred_fallthru
    _
  // Predicated region
  $region6: #{mtq_mnist_forward.13} parent=0 // pred_check
    _
  $region7: #{mtq_mnist_forward.13} parent=0 // pred_check_branch
    %13 = sbr.rel (0) target = $region9
  $region8: #{mtq_mnist_forward.13} parent=0 // pred_region
    _
  $region9: #{mtq_mnist_forward.13} parent=0 // pred_fallthru
    _
  // Predicated region
  $region10: #{mtq_mnist_forward.13} parent=0 // pred_check
    _
  $region11: #{mtq_mnist_forward.13} parent=0 // pred_check_branch
    %15 = sbr.rel (0) target = $region13
  $region12: #{mtq_mnist_forward.13} parent=0 // pred_region
    _
  $region13: #{mtq_mnist_forward.13} parent=0 // pred_fallthru
    _
  %v16 = vld [vmem:[%s0] sm:$0x1]
  %v17 = vld [vmem:[%s1] sm:$0xff]
  %v18 = vld [vmem:[%s1 + $0x8] sm:$0xff]
  %v19 = vld [vmem:[%s1 + $0x10] sm:$0xff]
  %v20 = vld [vmem:[%s1 + $0x18] sm:$0xff]
  %v21 = vld [vmem:[%s1 + $0x20] sm:$0xff]
  %v22 = vld [vmem:[%s1 + $0x28] sm:$0xff]
  %v23 = vld [vmem:[%s1 + $0x30] sm:$0xff]
  %v24 = vld [vmem:[%s1 + $0x38] sm:$0xff]
  %v25 = vld [vmem:[%s1 + $0x40] sm:$0xff]
  %v26 = vld [vmem:[%s1 + $0x48] sm:$0xff]
  %v27 = vld [vmem:[%s1 + $0x50] sm:$0xff]
  %v28 = vld [vmem:[%s1 + $0x58] sm:$0xff]
  %v29 = vld [vmem:[%s1 + $0x60] sm:$0xff]
  %v30 = vld [vmem:[%s1 + $0x68] sm:$0xff]
  %v31 = vld [vmem:[%s1 + $0x70] sm:$0xff]
  %v32 = vld [vmem:[%s1 + $0x78] sm:$0xff]
  %v33 = vld [vmem:[%s1 + $0x80] sm:$0xff]
  %v34 = vld [vmem:[%s1 + $0x88] sm:$0xff]
  %v35 = vld [vmem:[%s1 + $0x90] sm:$0xff]
  %v36 = vld [vmem:[%s1 + $0x98] sm:$0xff]
  %v37 = vld [vmem:[%s1 + $0xa0] sm:$0xff]
  %v38 = vld [vmem:[%s1 + $0xa8] sm:$0xff]
  %v39 = vld [vmem:[%s1 + $0xb0] sm:$0xff]
  %v40 = vld [vmem:[%s1 + $0xb8] sm:$0xff]
  %v41 = vld [vmem:[%s1 + $0xc0] sm:$0xff]
  %v42 = vld [vmem:[%s1 + $0xc8] sm:$0xff]
  %v43 = vld [vmem:[%s1 + $0xd0] sm:$0xff]
  %v44 = vld [vmem:[%s1 + $0xd8] sm:$0xff]
  %v45 = vld [vmem:[%s1 + $0xe0] sm:$0xff]
  %v46 = vld [vmem:[%s1 + $0xe8] sm:$0xff]
  %v47 = vld [vmem:[%s1 + $0xf0] sm:$0xff]
  %v48 = vld [vmem:[%s1 + $0xf8] sm:$0xff]
  %v49 = vld [vmem:[%s1 + $0x100] sm:$0xff]
  %v50 = vld [vmem:[%s1 + $0x108] sm:$0xff]
  %v51 = vld [vmem:[%s1 + $0x110] sm:$0xff]
  %v52 = vld [vmem:[%s1 + $0x118] sm:$0xff]
  %v53 = vld [vmem:[%s1 + $0x120] sm:$0xff]
  %v54 = vld [vmem:[%s1 + $0x128] sm:$0xff]
  %v55 = vld [vmem:[%s1 + $0x130] sm:$0xff]
  %v56 = vld [vmem:[%s1 + $0x138] sm:$0xff]
  %v57 = vld [vmem:[%s1 + $0x140] sm:$0xff]
  %v58 = vld [vmem:[%s1 + $0x148] sm:$0xff]
  %v59 = vld [vmem:[%s1 + $0x150] sm:$0xff]
  %v60 = vld [vmem:[%s1 + $0x158] sm:$0xff]
  %v61 = vld [vmem:[%s1 + $0x160] sm:$0xff]
  %v62 = vld [vmem:[%s1 + $0x168] sm:$0xff]
  %v63 = vld [vmem:[%s1 + $0x170] sm:$0xff]
  %v64 = vld [vmem:[%s1 + $0x178] sm:$0xff]
  %v65 = vld [vmem:[%s1 + $0x180] sm:$0xff]
  %v66 = vld [vmem:[%s1 + $0x188] sm:$0xff]
  %v67 = vld [vmem:[%s1 + $0x190] sm:$0xff]
  %v68 = vld [vmem:[%s1 + $0x198] sm:$0xff]
  %v69 = vld [vmem:[%s1 + $0x1a0] sm:$0xff]
  %v70 = vld [vmem:[%s1 + $0x1a8] sm:$0xff]
  %v71 = vld [vmem:[%s1 + $0x1b0] sm:$0xff]
  %v72 = vld [vmem:[%s1 + $0x1b8] sm:$0xff]
  %v73 = vld [vmem:[%s1 + $0x1c0] sm:$0xff]
  %v74 = vld [vmem:[%s1 + $0x1c8] sm:$0xff]
  %v75 = vld [vmem:[%s1 + $0x1d0] sm:$0xff]
  %v76 = vld [vmem:[%s1 + $0x1d8] sm:$0xff]
  %v77 = vld [vmem:[%s1 + $0x1e0] sm:$0xff]
  %v78 = vld [vmem:[%s1 + $0x1e8] sm:$0xff]
  %v79 = vld [vmem:[%s1 + $0x1f0] sm:$0xff]
  %v80 = vld [vmem:[%s1 + $0x1f8] sm:$0xff]
  %v81 = vld [vmem:[%s1 + $0x200] sm:$0xff]
  %v82 = vld [vmem:[%s1 + $0x208] sm:$0xff]
  %v83 = vld [vmem:[%s1 + $0x210] sm:$0xff]
  %v84 = vld [vmem:[%s1 + $0x218] sm:$0xff]
  %v85 = vld [vmem:[%s1 + $0x220] sm:$0xff]
  %v86 = vld [vmem:[%s1 + $0x228] sm:$0xff]
  %v87 = vld [vmem:[%s1 + $0x230] sm:$0xff]
  %v88 = vld [vmem:[%s1 + $0x238] sm:$0xff]
  %v89 = vld [vmem:[%s1 + $0x240] sm:$0xff]
  %v90 = vld [vmem:[%s1 + $0x248] sm:$0xff]
  %v91 = vld [vmem:[%s1 + $0x250] sm:$0xff]
  %v92 = vld [vmem:[%s1 + $0x258] sm:$0xff]
  %v93 = vld [vmem:[%s1 + $0x260] sm:$0xff]
  %v94 = vld [vmem:[%s1 + $0x268] sm:$0xff]
  %v95 = vld [vmem:[%s1 + $0x270] sm:$0xff]
  %v96 = vld [vmem:[%s1 + $0x278] sm:$0xff]
  %v97 = vld [vmem:[%s1 + $0x280] sm:$0xff]
  %v98 = vld [vmem:[%s1 + $0x288] sm:$0xff]
  %v99 = vld [vmem:[%s1 + $0x290] sm:$0xff]
  %v100 = vld [vmem:[%s1 + $0x298] sm:$0xff]
  %v101 = vld [vmem:[%s1 + $0x2a0] sm:$0xf]
  %v102 = vld [vmem:[%s1 + $0x2a8] sm:$0xf]
  %v103 = vld [vmem:[%s1 + $0x2b0] sm:$0xf]
  %v104 = vld [vmem:[%s1 + $0x2b8] sm:$0xf]
  %v105 = vld [vmem:[%s1 + $0x2c0] sm:$0xf]
  %v106 = vld [vmem:[%s1 + $0x2c8] sm:$0xf]
  %v107 = vld [vmem:[%s1 + $0x2d0] sm:$0xf]
  %v108 = vld [vmem:[#allocation2] sm:$0x1]
  %110 = vset.pattern.permute.xlu0 0
  %111 = vperm.xlu0 %110, %v108
  %v112 = vpop.permute.xlu0 %111
  %v114 = vlaneseq
  %v115 = vshrl.u32 %v114, 7
  %v116 = vsub.s32 0, %v115
  %v117 = vrot.slane %v112, %v116
  %vm118 = vcmask 818176
  %v120 = vsel %vm118, %v16, 0
  %vm122 = vcmask 1043456
  %v124 = vsel %vm122, %v101, 0
  %v127 = vsel %vm122, %v102, 0
  %v130 = vsel %vm122, %v103, 0
  %v133 = vsel %vm122, %v104, 0
  %v136 = vsel %vm122, %v105, 0
  %v139 = vsel %vm122, %v106, 0
  %v142 = vsel %vm122, %v107, 0
  %144 = vmatprep.subr.mxu0 %v18
  %145 = vmatpush1.msra.mxu0 %v17
  %146 = vmatprep.subr.mxu0 %v25
  %147 = vmatpush1.msra.mxu0 %v24
  %148 = vmatprep.subr.mxu0 %v32
  %149 = vmatpush1.msra.mxu0 %v31
  %150 = vmatprep.subr.mxu0 %v39
  %151 = vmatpush1.msra.mxu0 %v38
  %152 = vmatprep.subr.mxu0 %v46
  %153 = vmatpush1.msra.mxu0 %v45
  %154 = vmatprep.subr.mxu0 %v53
  %155 = vmatpush1.msra.mxu0 %v52
  %156 = vmatprep.subr.mxu0 %v60
  %157 = vmatpush1.msra.mxu0 %v59
  %158 = vmatprep.subr.mxu0 %v67
  %159 = vmatpush1.msra.mxu0 %v66
  %160 = vmatprep.subr.mxu0 %v74
  %161 = vmatpush1.msra.mxu0 %v73
  %162 = vmatprep.subr.mxu0 %v81
  %163 = vmatpush1.msra.mxu0 %v80
  %164 = vmatprep.subr.mxu0 %v88
  %165 = vmatpush1.msra.mxu0 %v87
  %166 = vmatprep.subr.mxu0 %v95
  %167 = vmatpush1.msra.mxu0 %v94
  %168 = vmatprep.subr.mxu0 %v127
  %169 = vmatpush1.msra.mxu0 %v124
  %170 = vmatprep.subr.mxu0 0.0
  %171 = vmatpush1.msra.mxu0 0.0
  %172 = vmatprep.subr.mxu0 0.0
  %173 = vmatpush1.msra.mxu0 0.0
  %174 = vmatprep.subr.mxu0 0.0
  %175 = vmatpush1.msra.mxu0 0.0
  %176 = vmatprep.subr.mxu0 0.0
  %177 = vmatpush1.msra.mxu0 0.0
  %178 = vmatprep.subr.mxu0 0.0
  %179 = vmatpush1.msra.mxu0 0.0
  %180 = vmatprep.subr.mxu0 0.0
  %181 = vmatpush1.msra.mxu0 0.0
  %182 = vmatprep.subr.mxu0 0.0
  %183 = vmatpush1.msra.mxu0 0.0
  %184 = vmatprep.subr.mxu0 0.0
  %185 = vmatpush1.msra.mxu0 0.0
  %186 = vmatprep.subr.mxu0 0.0
  %187 = vmatpush1.msra.mxu0 0.0
  %188 = vmatprep.subr.mxu0 0.0
  %189 = vmatpush1.msra.mxu0 0.0
  %190 = vmatprep.subr.mxu0 0.0
  %191 = vmatpush1.msra.mxu0 0.0
  %192 = vmatprep.subr.mxu0 0.0
  %193 = vmatpush1.msra.mxu0 0.0
  %194 = vmatprep.subr.mxu0 0.0
  %195 = vmatpush1.msra.mxu0 0.0
  %196 = vmatprep.subr.mxu0 0.0
  %197 = vmatpush1.msra.mxu0 0.0
  %198 = vmatprep.subr.mxu0 0.0
  %199 = vmatpush1.msra.mxu0 0.0
  %200 = vmatprep.subr.mxu0 0.0
  %201 = vmatpush1.msra.mxu0 0.0
  %202 = vmatprep.subr.mxu0 0.0
  %203 = vmatpush1.msra.mxu0 0.0
  %204 = vmatprep.subr.mxu0 0.0
  %205 = vmatpush1.msra.mxu0 0.0
  %206 = vmatprep.subr.mxu0 0.0
  %207 = vmatpush1.msra.mxu0 0.0
  %208 = vmatprep.mubr.f32.mxu0 0.0
  %209 = vmatmul.mubr.f32.gmra.mrb[0].mxu0 %v120
  %v210 = vpop.f32.mrb[0].mxu0
  %v211 = vadd.f32 %v117, %v210
  %v212 = vpop.f32.mrb[0].mxu0
  %v213 = vadd.f32 %v117, %v212
  %214 = vdwg.mxu0
  %215 = vmatprep.subr.mxu0 %v20
  %216 = vmatpush1.msra.mxu0 %v19
  %217 = vmatprep.subr.mxu0 %v27
  %218 = vmatpush1.msra.mxu0 %v26
  %219 = vmatprep.subr.mxu0 %v34
  %220 = vmatpush1.msra.mxu0 %v33
  %221 = vmatprep.subr.mxu0 %v41
  %222 = vmatpush1.msra.mxu0 %v40
  %223 = vmatprep.subr.mxu0 %v48
  %224 = vmatpush1.msra.mxu0 %v47
  %225 = vmatprep.subr.mxu0 %v55
  %226 = vmatpush1.msra.mxu0 %v54
  %227 = vmatprep.subr.mxu0 %v62
  %228 = vmatpush1.msra.mxu0 %v61
  %229 = vmatprep.subr.mxu0 %v69
  %230 = vmatpush1.msra.mxu0 %v68
  %231 = vmatprep.subr.mxu0 %v76
  %232 = vmatpush1.msra.mxu0 %v75
  %233 = vmatprep.subr.mxu0 %v83
  %234 = vmatpush1.msra.mxu0 %v82
  %235 = vmatprep.subr.mxu0 %v90
  %236 = vmatpush1.msra.mxu0 %v89
  %237 = vmatprep.subr.mxu0 %v97
  %238 = vmatpush1.msra.mxu0 %v96
  %239 = vmatprep.subr.mxu0 %v133
  %240 = vmatpush1.msra.mxu0 %v130
  %241 = vmatprep.subr.mxu0 0.0
  %242 = vmatpush1.msra.mxu0 0.0
  %243 = vmatprep.subr.mxu0 0.0
  %244 = vmatpush1.msra.mxu0 0.0
  %245 = vmatprep.subr.mxu0 0.0
  %246 = vmatpush1.msra.mxu0 0.0
  %247 = vmatprep.subr.mxu0 0.0
  %248 = vmatpush1.msra.mxu0 0.0
  %249 = vmatprep.subr.mxu0 0.0
  %250 = vmatpush1.msra.mxu0 0.0
  %251 = vmatprep.subr.mxu0 0.0
  %252 = vmatpush1.msra.mxu0 0.0
  %253 = vmatprep.subr.mxu0 0.0
  %254 = vmatpush1.msra.mxu0 0.0
  %255 = vmatprep.subr.mxu0 0.0
  %256 = vmatpush1.msra.mxu0 0.0
  %257 = vmatprep.subr.mxu0 0.0
  %258 = vmatpush1.msra.mxu0 0.0
  %259 = vmatprep.subr.mxu0 0.0
  %260 = vmatpush1.msra.mxu0 0.0
  %261 = vmatprep.subr.mxu0 0.0
  %262 = vmatpush1.msra.mxu0 0.0
  %263 = vmatprep.subr.mxu0 0.0
  %264 = vmatpush1.msra.mxu0 0.0
  %265 = vmatprep.subr.mxu0 0.0
  %266 = vmatpush1.msra.mxu0 0.0
  %267 = vmatprep.subr.mxu0 0.0
  %268 = vmatpush1.msra.mxu0 0.0
  %269 = vmatprep.subr.mxu0 0.0
  %270 = vmatpush1.msra.mxu0 0.0
  %271 = vmatprep.subr.mxu0 0.0
  %272 = vmatpush1.msra.mxu0 0.0
  %273 = vmatprep.subr.mxu0 0.0
  %274 = vmatpush1.msra.mxu0 0.0
  %275 = vmatprep.subr.mxu0 0.0
  %276 = vmatpush1.msra.mxu0 0.0
  %277 = vmatprep.subr.mxu0 0.0
  %278 = vmatpush1.msra.mxu0 0.0
  %279 = vmatprep.mubr.f32.mxu0 0.0
  %280 = vmatmul.mubr.f32.gmra.mrb[0].mxu0 %v120
  %v281 = vpop.f32.mrb[0].mxu0
  %v282 = vadd.f32 %v117, %v281
  %v283 = vpop.f32.mrb[0].mxu0
  %v284 = vadd.f32 %v117, %v283
  %285 = vdwg.mxu0
  %286 = vmatprep.subr.mxu0 %v22
  %287 = vmatpush1.msra.mxu0 %v21
  %288 = vmatprep.subr.mxu0 %v29
  %289 = vmatpush1.msra.mxu0 %v28
  %290 = vmatprep.subr.mxu0 %v36
  %291 = vmatpush1.msra.mxu0 %v35
  %292 = vmatprep.subr.mxu0 %v43
  %293 = vmatpush1.msra.mxu0 %v42
  %294 = vmatprep.subr.mxu0 %v50
  %295 = vmatpush1.msra.mxu0 %v49
  %296 = vmatprep.subr.mxu0 %v57
  %297 = vmatpush1.msra.mxu0 %v56
  %298 = vmatprep.subr.mxu0 %v64
  %299 = vmatpush1.msra.mxu0 %v63
  %300 = vmatprep.subr.mxu0 %v71
  %301 = vmatpush1.msra.mxu0 %v70
  %302 = vmatprep.subr.mxu0 %v78
  %303 = vmatpush1.msra.mxu0 %v77
  %304 = vmatprep.subr.mxu0 %v85
  %305 = vmatpush1.msra.mxu0 %v84
  %306 = vmatprep.subr.mxu0 %v92
  %307 = vmatpush1.msra.mxu0 %v91
  %308 = vmatprep.subr.mxu0 %v99
  %309 = vmatpush1.msra.mxu0 %v98
  %310 = vmatprep.subr.mxu0 %v139
  %311 = vmatpush1.msra.mxu0 %v136
  %312 = vmatprep.subr.mxu0 0.0
  %313 = vmatpush1.msra.mxu0 0.0
  %314 = vmatprep.subr.mxu0 0.0
  %315 = vmatpush1.msra.mxu0 0.0
  %316 = vmatprep.subr.mxu0 0.0
  %317 = vmatpush1.msra.mxu0 0.0
  %318 = vmatprep.subr.mxu0 0.0
  %319 = vmatpush1.msra.mxu0 0.0
  %320 = vmatprep.subr.mxu0 0.0
  %321 = vmatpush1.msra.mxu0 0.0
  %322 = vmatprep.subr.mxu0 0.0
  %323 = vmatpush1.msra.mxu0 0.0
  %324 = vmatprep.subr.mxu0 0.0
  %325 = vmatpush1.msra.mxu0 0.0
  %326 = vmatprep.subr.mxu0 0.0
  %327 = vmatpush1.msra.mxu0 0.0
  %328 = vmatprep.subr.mxu0 0.0
  %329 = vmatpush1.msra.mxu0 0.0
  %330 = vmatprep.subr.mxu0 0.0
  %331 = vmatpush1.msra.mxu0 0.0
  %332 = vmatprep.subr.mxu0 0.0
  %333 = vmatpush1.msra.mxu0 0.0
  %334 = vmatprep.subr.mxu0 0.0
  %335 = vmatpush1.msra.mxu0 0.0
  %336 = vmatprep.subr.mxu0 0.0
  %337 = vmatpush1.msra.mxu0 0.0
  %338 = vmatprep.subr.mxu0 0.0
  %339 = vmatpush1.msra.mxu0 0.0
  %340 = vmatprep.subr.mxu0 0.0
  %341 = vmatpush1.msra.mxu0 0.0
  %342 = vmatprep.subr.mxu0 0.0
  %343 = vmatpush1.msra.mxu0 0.0
  %344 = vmatprep.subr.mxu0 0.0
  %345 = vmatpush1.msra.mxu0 0.0
  %346 = vmatprep.subr.mxu0 0.0
  %347 = vmatpush1.msra.mxu0 0.0
  %348 = vmatprep.subr.mxu0 0.0
  %349 = vmatpush1.msra.mxu0 0.0
  %350 = vmatprep.mubr.f32.mxu0 0.0
  %351 = vmatmul.mubr.f32.gmra.mrb[0].mxu0 %v120
  %v352 = vpop.f32.mrb[0].mxu0
  %v353 = vadd.f32 %v117, %v352
  %v354 = vpop.f32.mrb[0].mxu0
  %v355 = vadd.f32 %v117, %v354
  %356 = vdwg.mxu0
  %357 = vmatprep.subr.mxu0 0.0
  %358 = vmatpush1.msra.mxu0 %v23
  %359 = vmatprep.subr.mxu0 0.0
  %360 = vmatpush1.msra.mxu0 %v30
  %361 = vmatprep.subr.mxu0 0.0
  %362 = vmatpush1.msra.mxu0 %v37
  %363 = vmatprep.subr.mxu0 0.0
  %364 = vmatpush1.msra.mxu0 %v44
  %365 = vmatprep.subr.mxu0 0.0
  %366 = vmatpush1.msra.mxu0 %v51
  %367 = vmatprep.subr.mxu0 0.0
  %368 = vmatpush1.msra.mxu0 %v58
  %369 = vmatprep.subr.mxu0 0.0
  %370 = vmatpush1.msra.mxu0 %v65
  %371 = vmatprep.subr.mxu0 0.0
  %372 = vmatpush1.msra.mxu0 %v72
  %373 = vmatprep.subr.mxu0 0.0
  %374 = vmatpush1.msra.mxu0 %v79
  %375 = vmatprep.subr.mxu0 0.0
  %376 = vmatpush1.msra.mxu0 %v86
  %377 = vmatprep.subr.mxu0 0.0
  %378 = vmatpush1.msra.mxu0 %v93
  %379 = vmatprep.subr.mxu0 0.0
  %380 = vmatpush1.msra.mxu0 %v100
  %381 = vmatprep.subr.mxu0 0.0
  %382 = vmatpush1.msra.mxu0 %v142
  %383 = vmatprep.subr.mxu0 0.0
  %384 = vmatpush1.msra.mxu0 0.0
  %385 = vmatprep.subr.mxu0 0.0
  %386 = vmatpush1.msra.mxu0 0.0
  %387 = vmatprep.subr.mxu0 0.0
  %388 = vmatpush1.msra.mxu0 0.0
  %389 = vmatprep.subr.mxu0 0.0
  %390 = vmatpush1.msra.mxu0 0.0
  %391 = vmatprep.subr.mxu0 0.0
  %392 = vmatpush1.msra.mxu0 0.0
  %393 = vmatprep.subr.mxu0 0.0
  %394 = vmatpush1.msra.mxu0 0.0
  %395 = vmatprep.subr.mxu0 0.0
  %396 = vmatpush1.msra.mxu0 0.0
  %397 = vmatprep.subr.mxu0 0.0
  %398 = vmatpush1.msra.mxu0 0.0
  %399 = vmatprep.subr.mxu0 0.0
  %400 = vmatpush1.msra.mxu0 0.0
  %401 = vmatprep.subr.mxu0 0.0
  %402 = vmatpush1.msra.mxu0 0.0
  %403 = vmatprep.subr.mxu0 0.0
  %404 = vmatpush1.msra.mxu0 0.0
  %405 = vmatprep.subr.mxu0 0.0
  %406 = vmatpush1.msra.mxu0 0.0
  %407 = vmatprep.subr.mxu0 0.0
  %408 = vmatpush1.msra.mxu0 0.0
  %409 = vmatprep.subr.mxu0 0.0
  %410 = vmatpush1.msra.mxu0 0.0
  %411 = vmatprep.subr.mxu0 0.0
  %412 = vmatpush1.msra.mxu0 0.0
  %413 = vmatprep.subr.mxu0 0.0
  %414 = vmatpush1.msra.mxu0 0.0
  %415 = vmatprep.subr.mxu0 0.0
  %416 = vmatpush1.msra.mxu0 0.0
  %417 = vmatprep.subr.mxu0 0.0
  %418 = vmatpush1.msra.mxu0 0.0
  %419 = vmatprep.subr.mxu0 0.0
  %420 = vmatpush1.msra.mxu0 0.0
  %421 = vmatprep.mubr.f32.mxu0 0.0
  %422 = vmatmul.mubr.f32.gmra.mrb[0].mxu0 %v120
  %v423 = vpop.f32.mrb[0].mxu0
  %v424 = vadd.f32 %v117, %v423
  %v425 = vpop.f32.mrb[0].mxu0
  %426 = vdwg.mxu0
  %v427 = vtanh.pop %v211
  %v428 = vtanh.pop %v213
  %v429 = vtanh.pop %v282
  %v430 = vtanh.pop %v284
  %v431 = vtanh.pop %v353
  %v432 = vtanh.pop %v355
  %v433 = vtanh.pop %v424
  %v441 = vcombine.low %v427, %v428
  %v442 = vcombine.low %v429, %v430
  %v443 = vcombine.low %v431, %v432
  %v445 = vunpack.c.l.s4 1966171168
  %v446 = vunpack.c.0.s8 %v445
  %v447 = vlaneseq
  %v448 = vshrl.u32 %v447, 7
  %v449 = vsub.s32 %v446, %v448
  %v450 = vrot.slane %v441, %v449
  %v452 = vunpack.c.l.s4 1966171168
  %v453 = vunpack.c.0.s8 %v452
  %v454 = vlaneseq
  %v455 = vshrl.u32 %v454, 7
  %v456 = vsub.s32 %v453, %v455
  %v457 = vrot.slane %v442, %v456
  %v459 = vunpack.c.l.s4 1966171168
  %v460 = vunpack.c.0.s8 %v459
  %v461 = vlaneseq
  %v462 = vshrl.u32 %v461, 7
  %v463 = vsub.s32 %v460, %v462
  %v464 = vrot.slane %v443, %v463
  %v466 = vunpack.c.l.s4 1966171168
  %v467 = vunpack.c.0.s8 %v466
  %v468 = vlaneseq
  %v469 = vshrl.u32 %v468, 7
  %v470 = vsub.s32 %v467, %v469
  %v471 = vrot.slane %v433, %v470
  %v472 = vcombine.low %v450, %v457
  %v473 = vcombine.low %v464, %v471
  %v475 = vunpack.c.l.s4 1966171168
  %v476 = vunpack.c.0.s8 %v475
  %v477 = vlaneseq
  %v478 = vshrl.u32 %v477, 7
  %v479 = vsub.s32 %v476, %v478
  %v480 = vrot.slane %v472, %v479
  %v482 = vunpack.c.l.s4 1966171168
  %v483 = vunpack.c.0.s8 %v482
  %v484 = vlaneseq
  %v485 = vshrl.u32 %v484, 7
  %v486 = vsub.s32 %v483, %v485
  %v487 = vrot.slane %v473, %v486
  %v488 = vcombine.low %v480, %v487
  %v490 = vlaneseq
  %vm491 = vcmp.ge.s32.totalorder %v490, 0
  %vm492 = vcmp.lt.s32.totalorder %v490, 800
  %vm493 = vmand %vm491, %vm492
  %494 = vst.msk [vmem:[%s3] sm:$0x7f] %vm493, %v488
  // Predicated region
  $region14: #{mtq_mnist_forward.13} parent=0 // pred_check
    _
  $region15: #{mtq_mnist_forward.13} parent=0 // pred_check_branch
    %496 = sbr.rel (0) target = $region17
  $region16: #{mtq_mnist_forward.13} parent=0 // pred_region
    _
  $region17: #{mtq_mnist_forward.13} parent=0 // pred_fallthru
    _
  // Predicated region
  $region18: #{mtq_mnist_forward.13} parent=0 // pred_check
    _
  $region19: #{mtq_mnist_forward.13} parent=0 // pred_check_branch
    %498 = sbr.rel (0) target = $region21
  $region20: #{mtq_mnist_forward.13} parent=0 // pred_region
    _
  $region21: #{mtq_mnist_forward.13} parent=0 // pred_fallthru
    _

</llo_original>
